<compile_context>
chip_gen: v7x
topology: tpu7x:2x2x1
jax: 0.10.0
libtpu: 0.0.40
codegen_flags: <defaults>
</compile_context>

<pallas_src>
import functools

import jax
import jax.numpy as jnp
import numpy as np
from jax import lax
from jax.experimental import pallas as pl
from jax.experimental.pallas import tpu as pltpu


# bf16 MXU operands (accumulation stays f32 via preferred_element_type) -> ~2-3x MXU
# throughput on v5e/v6e/v7x and half the weight / inter-kernel activation HBM traffic.
# Set to jnp.float32 for bit-exact parity with the f32 PyTorch reference.
MXU_DTYPE = jnp.bfloat16

_LN_EPS = 1e-5  # torch.nn.LayerNorm default


def _itemsize(dt):
    return np.dtype(dt).itemsize


def _vmem_limit_bytes():
    """Per-generation scoped-VMEM budget (~3/4 of physical: ~96MiB v5e/v6e, 48MiB v7x)."""
    try:
        cap = int(pltpu.get_tpu_info().vmem_capacity_bytes)
    except Exception:  # conservative fallback (v7x has 64 MiB per TensorCore)
        cap = 64 * 1024 * 1024
    return int(cap * 3 // 4)


def _pick_row_tile(m, bytes_per_row, budget):
    """Largest (8,*)-friendly row tile dividing m that fits `budget`; prefer >=2 grid
    steps so both v7x TensorCores get work."""
    cands = [t for t in (2048, 1024, 512, 256, 128, 64, 32, 16, 8) if m % t == 0]
    if not cands:
        return m
    fitting = [t for t in cands if t * bytes_per_row <= budget] or [cands[-1]]
    for t in fitting:
        if m // t >= 2:
            return t
    return fitting[-1]


def _pick_seq_tile(s):
    for t in (512, 256, 128, 64, 32, 16, 8):
        if s % t == 0:
            return t
    return s


def _pick_head_tile(bh, tq, sk, d, mxu_bytes, budget):
    """How many (batch*head) slices per attention grid step, VMEM-aware (includes the
    tq*sk score/prob block and double buffering)."""
    per_head = 2 * ((2 * tq * d + 2 * sk * d) * mxu_bytes + tq * sk * 4)
    cands = [t for t in (16, 8, 4, 2, 1) if bh % t == 0]
    fitting = [t for t in cands if t * per_head <= budget] or [1]
    for t in fitting:
        if bh // t >= 2:
            return t
    return fitting[-1]


# ---------------------------------------------------------------------------
# One-time weight preparation (hoisted out of the forward path).
# ---------------------------------------------------------------------------
def prepare_params(params, num_heads, *, mxu_dtype=MXU_DTYPE):
    D = params["Wq"].shape[0]
    H = num_heads
    d = D // H
    # NOTE: reference uses integer division: (dim_per_head // num_heads) ** -0.5.
    scale = float((d // H) ** (-0.5))

    wq_t = (params["Wq"].T * scale).astype(mxu_dtype)       # scale folded into Wq ...
    bq2 = (params["bq"] * scale).astype(jnp.float32).reshape(1, D)  # ... and bq
    wk_t = params["Wk"].T.astype(mxu_dtype)
    bk2 = params["bk"].astype(jnp.float32).reshape(1, D)
    wv_t = params["Wv"].T.astype(mxu_dtype)
    bv2 = params["bv"].astype(jnp.float32).reshape(1, D)
    wf_t = params["Wf"].T.astype(mxu_dtype)
    bf2 = params["bf"].astype(jnp.float32).reshape(1, D)

    return {
        # general (3-launch) path
        "wq_t": wq_t, "wk_t": wk_t, "wv_t": wv_t, "wf_t": wf_t,
        "bq2": bq2, "bk2": bk2, "bv2": bv2, "bf2": bf2,
        "gamma2": params["gamma"].astype(jnp.float32).reshape(1, D),
        "beta2": params["beta"].astype(jnp.float32).reshape(1, D),
        # per-sub-head slices for the fully fused small-shape kernel
        "wq_h": wq_t.reshape(D, H, d).transpose(1, 0, 2),    # (H, D, d)
        "wk_h": wk_t.reshape(D, H, d).transpose(1, 0, 2),
        "wv_h": wv_t.reshape(D, H, d).transpose(1, 0, 2),
        "wf_h": wf_t.reshape(H, d, D),                       # (H, d, D)
        "bq_h": bq2.reshape(H, 1, d),
        "bk_h": bk2.reshape(H, 1, d),
        "bv_h": bv2.reshape(H, 1, d),
    }


# ---------------------------------------------------------------------------
# Fully fused single-launch MHA (small shapes: launch/DMA-overhead bound regime).
# Grid step i == torch "head" index bh in the reference's view(B*H, -1, d):
# it owns input rows [bh*Sh, (bh+1)*Sh) where Sh = S // H.
# ---------------------------------------------------------------------------
def _fused_mha_kernel(q_ref, k_ref, v_ref,
                      wq_ref, wk_ref, wv_ref,
                      bq_ref, bk_ref, bv_ref,
                      wf_ref, bf_ref, g_ref, beta_ref,
                      o_ref, attn_ref, *, num_heads, eps, mxu_dtype):
    H = num_heads
    f32 = jnp.float32

    x_res = q_ref[0]                         # residual = query rows (f32)
    xq = x_res.astype(mxu_dtype)             # (Sh, D)
    xk = k_ref[0].astype(mxu_dtype)
    xv = v_ref[0].astype(mxu_dtype)
    Sh = xq.shape[0]
    D = wf_ref.shape[2]
    d = wq_ref.shape[2]

    def proj(x, w_ref, b_ref, h):
        return jnp.dot(x, w_ref[h], preferred_element_type=f32) + b_ref[h]

    # Per-sub-head projections (scale already folded into wq/bq at prep time).
    qh = [proj(xq, wq_ref, bq_ref, h).astype(mxu_dtype) for h in range(H)]  # (Sh, d)
    kh = [proj(xk, wk_ref, bk_ref, h).astype(mxu_dtype) for h in range(H)]
    vh = [proj(xv, wv_ref, bv_ref, h).astype(mxu_dtype) for h in range(H)]

    dn = (((1,), (1,)), ((), ()))            # contract the d axis (rhs "transposed")
    y = jnp.zeros((Sh, D), f32)
    for h in range(H):                        # row sub-head of the torch view
        s_blocks = [lax.dot_general(qh[h], kh[hp], dn, preferred_element_type=f32)
                    for hp in range(H)]       # (Sh, Sh) score blocks
        m = s_blocks[0].max(axis=-1, keepdims=True)
        for hp in range(1, H):
            m = jnp.maximum(m, s_blocks[hp].max(axis=-1, keepdims=True))
        e_blocks = [jnp.exp(s - m) for s in s_blocks]
        den = e_blocks[0].sum(axis=-1, keepdims=True)
        for hp in range(1, H):
            den = den + e_blocks[hp].sum(axis=-1, keepdims=True)
        inv = 1.0 / den                       # exact division (parity with torch)

        ctx = jnp.zeros((Sh, d), f32)
        for hp in range(H):                   # column sub-head
            p = e_blocks[hp] * inv
            attn_ref[0, h, hp] = p            # block-permuted layout, fixed in wrapper
            ctx = ctx + jnp.dot(p.astype(mxu_dtype), vh[hp],
                                preferred_element_type=f32)
        y = y + jnp.dot(ctx.astype(mxu_dtype), wf_ref[h],
                        preferred_element_type=f32)

    # final bias -> (dropout p=0 is identity) -> ReLU -> residual -> LayerNorm
    y = jnp.maximum(y + bf_ref[...], 0.0)
    z = x_res + y
    mean = jnp.mean(z, axis=-1, keepdims=True)
    zc = z - mean
    var = jnp.mean(zc * zc, axis=-1, keepdims=True)     # two-pass variance (stable)
    o_ref[0] = (zc * lax.rsqrt(var + eps)) * g_ref[...] + beta_ref[...]


def fused_mha_pallas(q4, k4, v4, pp, *, num_heads, mxu_dtype, vmem_limit, eps=_LN_EPS):
    BH, Sh, D = q4.shape
    H = num_heads
    d = D // H

    x_spec = pl.BlockSpec((1, Sh, D), lambda i: (i, 0, 0))
    w_spec = pl.BlockSpec((H, D, d), lambda i: (0, 0, 0))
    b_spec = pl.BlockSpec((H, 1, d), lambda i: (0, 0, 0))
    wf_spec = pl.BlockSpec((H, d, D), lambda i: (0, 0, 0))
    vec_spec = pl.BlockSpec((1, D), lambda i: (0, 0))
    out_spec = pl.BlockSpec((1, Sh, D), lambda i: (i, 0, 0))
    attn_spec = pl.BlockSpec((1, H, H, Sh, Sh), lambda i: (i, 0, 0, 0, 0))

    kernel = functools.partial(_fused_mha_kernel, num_heads=H, eps=eps,
                               mxu_dtype=mxu_dtype)
    return pl.pallas_call(
        kernel,
        out_shape=(jax.ShapeDtypeStruct((BH, Sh, D), jnp.float32),
                   jax.ShapeDtypeStruct((BH, H, H, Sh, Sh), jnp.float32)),
        grid=(BH,),
        in_specs=[x_spec, x_spec, x_spec,
                  w_spec, w_spec, w_spec,
                  b_spec, b_spec, b_spec,
                  wf_spec, vec_spec, vec_spec, vec_spec],
        out_specs=(out_spec, attn_spec),
        compiler_params=pltpu.CompilerParams(
            dimension_semantics=("parallel",),
            vmem_limit_bytes=vmem_limit),
    )(q4, k4, v4, pp["wq_h"], pp["wk_h"], pp["wv_h"],
      pp["bq_h"], pp["bk_h"], pp["bv_h"],
      pp["wf_h"], pp["bf2"], pp["gamma2"], pp["beta2"])


# ---------------------------------------------------------------------------
# General (large-shape) 3-launch path.
# ---------------------------------------------------------------------------
def _qkv_proj_kernel(q_ref, k_ref, v_ref, wq_ref, wk_ref, wv_ref,
                     bq_ref, bk_ref, bv_ref, qo_ref, ko_ref, vo_ref, *, mxu_dtype):
    def proj(x_ref, w_ref, b_ref, o_ref):
        y = jnp.dot(x_ref[...].astype(mxu_dtype), w_ref[...],
                    preferred_element_type=jnp.float32) + b_ref[...]
        o_ref[...] = y.astype(o_ref.dtype)
    # TODO(synk): when key is value is query (self-attention), a single [D,3D]
    # concatenated matmul with one input DMA would be cheaper.
    proj(q_ref, wq_ref, bq_ref, qo_ref)
    proj(k_ref, wk_ref, bk_ref, ko_ref)
    proj(v_ref, wv_ref, bv_ref, vo_ref)


def qkv_proj_pallas(q2d, k2d, v2d, pp, *, mxu_dtype, vmem_limit):
    M, D = q2d.shape
    mb = _itemsize(mxu_dtype)
    w_bytes = 2 * 3 * D * D * mb
    row_bytes = 2 * (3 * D * 4 + 3 * D * mb)
    tm = _pick_row_tile(M, row_bytes, max(vmem_limit - w_bytes, vmem_limit // 4))

    x_spec = pl.BlockSpec((tm, D), lambda i: (i, 0))
    w_spec = pl.BlockSpec((D, D), lambda i: (0, 0))   # resident across row tiles
    b_spec = pl.BlockSpec((1, D), lambda i: (0, 0))
    o_spec = pl.BlockSpec((tm, D), lambda i: (i, 0))
    out_sds = jax.ShapeDtypeStruct((M, D), mxu_dtype)  # bf16 inter-kernel activations

    kernel = functools.partial(_qkv_proj_kernel, mxu_dtype=mxu_dtype)
    return pl.pallas_call(
        kernel,
        out_shape=(out_sds, out_sds, out_sds),
        grid=(M // tm,),
        in_specs=[x_spec, x_spec, x_spec, w_spec, w_spec, w_spec,
                  b_spec, b_spec, b_spec],
        out_specs=(o_spec, o_spec, o_spec),
        compiler_params=pltpu.CompilerParams(dimension_semantics=("parallel",),
                                             vmem_limit_bytes=vmem_limit),
    )(q2d, k2d, v2d, pp["wq_t"], pp["wk_t"], pp["wv_t"],
      pp["bq2"], pp["bk2"], pp["bv2"])


def _attention_kernel(q_ref, k_ref, v_ref, ctx_ref, attn_ref, *, mxu_dtype):
    q = q_ref[...].astype(mxu_dtype)   # scale already folded into q (via Wq/bq)
    k = k_ref[...].astype(mxu_dtype)
    v = v_ref[...].astype(mxu_dtype)
    s = jnp.einsum("hqd,hkd->hqk", q, k, preferred_element_type=jnp.float32)
    s = s - jnp.max(s, axis=-1, keepdims=True)
    e = jnp.exp(s)                                              # f32 on the EUP
    p = e * (1.0 / jnp.sum(e, axis=-1, keepdims=True))          # exact normalization
    attn_ref[...] = p
    ctx_ref[...] = jnp.einsum("hqk,hkd->hqd", p.astype(mxu_dtype), v,
                              preferred_element_type=jnp.float32).astype(ctx_ref.dtype)


def attention_pallas(q_h, k_h, v_h, *, mxu_dtype, vmem_limit):
    BH, S, d = q_h.shape
    mb = _itemsize(mxu_dtype)
    tq = _pick_seq_tile(S)
    hb = _pick_head_tile(BH, tq, S, d, mb, vmem_limit // 2)

    kernel = functools.partial(_attention_kernel, mxu_dtype=mxu_dtype)
    return pl.pallas_call(
        kernel,
        out_shape=(jax.ShapeDtypeStruct((BH, S, d), mxu_dtype),
                   jax.ShapeDtypeStruct((BH, S, S), jnp.float32)),
        grid=(BH // hb, S // tq),
        in_specs=[pl.BlockSpec((hb, tq, d), lambda i, j: (i, j, 0)),
                  pl.BlockSpec((hb, S, d), lambda i, j: (i, 0, 0)),
                  pl.BlockSpec((hb, S, d), lambda i, j: (i, 0, 0))],
        out_specs=(pl.BlockSpec((hb, tq, d), lambda i, j: (i, j, 0)),
                   pl.BlockSpec((hb, tq, S), lambda i, j: (i, j, 0))),
        compiler_params=pltpu.CompilerParams(
            dimension_semantics=("parallel", "parallel"),
            vmem_limit_bytes=vmem_limit),
    )(q_h, k_h, v_h)


def _final_kernel(ctx_ref, res_ref, w_ref, b_ref, g_ref, beta_ref, o_ref,
                  *, eps, mxu_dtype):
    y = jnp.dot(ctx_ref[...].astype(mxu_dtype), w_ref[...],
                preferred_element_type=jnp.float32) + b_ref[...]
    y = jnp.maximum(y, 0.0)                  # ReLU (dropout p=0.0 is the identity)
    z = res_ref[...] + y
    mean = jnp.mean(z, axis=-1, keepdims=True)
    zc = z - mean
    var = jnp.mean(zc * zc, axis=-1, keepdims=True)   # two-pass variance
    o_ref[...] = (zc * lax.rsqrt(var + eps)) * g_ref[...] + beta_ref[...]


def final_pallas(ctx2d, res2d, pp, *, mxu_dtype, vmem_limit, eps=_LN_EPS):
    M, D = ctx2d.shape
    mb = _itemsize(mxu_dtype)
    w_bytes = 2 * D * D * mb
    row_bytes = 2 * (D * mb + 2 * D * 4)
    tm = _pick_row_tile(M, row_bytes, max(vmem_limit - w_bytes, vmem_limit // 4))

    kernel = functools.partial(_final_kernel, eps=eps, mxu_dtype=mxu_dtype)
    return pl.pallas_call(
        kernel,
        out_shape=jax.ShapeDtypeStruct((M, D), jnp.float32),
        grid=(M // tm,),
        in_specs=[pl.BlockSpec((tm, D), lambda i: (i, 0)),
                  pl.BlockSpec((tm, D), lambda i: (i, 0)),
                  pl.BlockSpec((D, D), lambda i: (0, 0)),
                  pl.BlockSpec((1, D), lambda i: (0, 0)),
                  pl.BlockSpec((1, D), lambda i: (0, 0)),
                  pl.BlockSpec((1, D), lambda i: (0, 0))],
        out_specs=pl.BlockSpec((tm, D), lambda i: (i, 0)),
        compiler_params=pltpu.CompilerParams(dimension_semantics=("parallel",),
                                             vmem_limit_bytes=vmem_limit),
    )(ctx2d, res2d, pp["wf_t"], pp["bf2"], pp["gamma2"], pp["beta2"])


# ---------------------------------------------------------------------------
# Full MultiHeadAttention forward
# ---------------------------------------------------------------------------
def _use_fused_path(B, S, D, H):
    # Single-launch kernel only for small, launch/DMA-overhead-bound problems
    # (bounded unrolling over H and tiny per-step working set).
    return (S % H == 0) and (H <= 4) and (B * S * D <= 64 * 1024) \
        and (S <= 256) and (D <= 1024)


def multi_head_attention(key, value, query, prepared, num_heads,
                         *, mxu_dtype=MXU_DTYPE, eps=_LN_EPS):
    B, S, D = query.shape
    H = num_heads
    d = D // H
    M = B * S
    vmem_limit = _vmem_limit_bytes()

    # TODO(synk): attn_mask path (masked_fill_) omitted -- reference is called with
    # attn_mask=None here.

    if _use_fused_path(B, S, D, H):
        Sh = S // H
        # torch .view(B*H, -1, d) groups consecutive blocks of Sh input rows per "head";
        # these reshapes are free row-major re-chunkings done outside the kernel.
        q4 = query.reshape(B * H, Sh, D)
        k4 = key.reshape(B * H, Sh, D)
        v4 = value.reshape(B * H, Sh, D)
        out4, attn_perm = fused_mha_pallas(q4, k4, v4, prepared, num_heads=H,
                                           mxu_dtype=mxu_dtype,
                                           vmem_limit=vmem_limit, eps=eps)
        output = out4.reshape(B, S, D)
        # attn_perm[bh, h, hp, a, ap] == attention[bh, a*H + h, ap*H + hp]
        attention = attn_perm.transpose(0, 3, 1, 4, 2).reshape(B * H, S, S)
        return output, attention

    # -------- general 3-launch path --------
    q_p, k_p, v_p = qkv_proj_pallas(query.reshape(M, D), key.reshape(M, D),
                                    value.reshape(M, D), prepared,
                                    mxu_dtype=mxu_dtype, vmem_limit=vmem_limit)
    # torch .view(B*H, -1, d) on contiguous buffers == free row-major reshape.
    q_h = q_p.reshape(B * H, S, d)
    k_h = k_p.reshape(B * H, S, d)
    v_h = v_p.reshape(B * H, S, d)

    context, attention = attention_pallas(q_h, k_h, v_h, mxu_dtype=mxu_dtype,
                                          vmem_limit=vmem_limit)
    ctx2d = context.reshape(M, D)
    out2d = final_pallas(ctx2d, query.reshape(M, D), prepared,
                         mxu_dtype=mxu_dtype, vmem_limit=vmem_limit, eps=eps)
    return out2d.reshape(B, S, D), attention


# ---------------------------------------------------------------------------
# Pure-JAX f32 reference (mirrors the PyTorch module exactly, incl. the raw
# row-major .view head split and the integer-division scale).
# ---------------------------------------------------------------------------
def _reference_mha(key, value, query, params, num_heads):
    B, S, D = query.shape
    d = D // num_heads
    k = key.reshape(-1, D) @ params["Wk"].T + params["bk"]
    v = value.reshape(-1, D) @ params["Wv"].T + params["bv"]
    q = query.reshape(-1, D) @ params["Wq"].T + params["bq"]
    k = k.reshape(B * num_heads, -1, d)
    v = v.reshape(B * num_heads, -1, d)
    q = q.reshape(B * num_heads, -1, d)
    scale = (d // num_heads) ** (-0.5)
    attn = jnp.einsum("bqd,bkd->bqk", q, k) * scale
    attn = jax.nn.softmax(attn, axis=2)
    ctx = jnp.einsum("bqk,bkd->bqd", attn, v).reshape(B, -1, D)
    out = jnp.maximum(ctx @ params["Wf"].T + params["bf"], 0.0)
    z = query + out
    mean = z.mean(-1, keepdims=True)
    var = ((z - mean) ** 2).mean(-1, keepdims=True)
    out = (z - mean) / jnp.sqrt(var + _LN_EPS) * params["gamma"] + params["beta"]
    return out, attn


# ---------------------------------------------------------------------------
if __name__ == "__main__":
    B, S, D, H = 2, 8, 32, 2  # batch, seq, model_dim, num_heads (dim_per_head=16)

    rng = jax.random.PRNGKey(0)
    ks = jax.random.split(rng, 12)
    init = 0.02

    params = {
        "Wk": jax.random.normal(ks[0], (D, D), jnp.float32) * init,
        "bk": jax.random.normal(ks[1], (D,), jnp.float32) * init,
        "Wv": jax.random.normal(ks[2], (D, D), jnp.float32) * init,
        "bv": jax.random.normal(ks[3], (D,), jnp.float32) * init,
        "Wq": jax.random.normal(ks[4], (D, D), jnp.float32) * init,
        "bq": jax.random.normal(ks[5], (D,), jnp.float32) * init,
        "Wf": jax.random.normal(ks[6], (D, D), jnp.float32) * init,
        "bf": jax.random.normal(ks[7], (D,), jnp.float32) * init,
        "gamma": jnp.ones((D,), jnp.float32),   # LayerNorm weight (torch default)
        "beta": jnp.zeros((D,), jnp.float32),   # LayerNorm bias  (torch default)
    }

    key_in = jax.random.normal(ks[8], (B, S, D), jnp.float32)
    value_in = jax.random.normal(ks[9], (B, S, D), jnp.float32)
    query_in = jax.random.normal(ks[10], (B, S, D), jnp.float32)

    # One-time weight prep (transpose / sub-head split / scale folding / bf16 cast),
    # hoisted out of the per-call forward path.
    prepared = prepare_params(params, H)

    output, attention = multi_head_attention(key_in, value_in, query_in, prepared, H)
    jax.block_until_ready((output, attention))

    assert output.shape == (B, S, D)
    assert attention.shape == (B * H, S, S)
    assert bool(jnp.all(jnp.isfinite(output)))

    # Validate against the pure-JAX f32 reference (tolerance covers bf16 MXU operands).
    ref_out, ref_attn = _reference_mha(key_in, value_in, query_in, params, H)
    assert bool(jnp.allclose(output, ref_out, rtol=2e-2, atol=2e-2)), \
        float(jnp.max(jnp.abs(output - ref_out)))
    assert bool(jnp.allclose(attention, ref_attn, rtol=2e-2, atol=2e-2)), \
        float(jnp.max(jnp.abs(attention - ref_attn)))

    print("KERNEL_OK")
</pallas_src>

<mosaic_0001>
module attributes {stable_mosaic.version = 11 : i64} {
  func.func @_fused_mha_kernel(%arg0: i32, %arg1: memref<1x4x32xf32, #tpu.memory_space<vmem>>, %arg2: memref<1x4x32xf32, #tpu.memory_space<vmem>>, %arg3: memref<1x4x32xf32, #tpu.memory_space<vmem>>, %arg4: memref<2x32x16xbf16, #tpu.memory_space<vmem>>, %arg5: memref<2x32x16xbf16, #tpu.memory_space<vmem>>, %arg6: memref<2x32x16xbf16, #tpu.memory_space<vmem>>, %arg7: memref<2x1x16xf32, #tpu.memory_space<vmem>>, %arg8: memref<2x1x16xf32, #tpu.memory_space<vmem>>, %arg9: memref<2x1x16xf32, #tpu.memory_space<vmem>>, %arg10: memref<2x16x32xbf16, #tpu.memory_space<vmem>>, %arg11: memref<1x32xf32, #tpu.memory_space<vmem>>, %arg12: memref<1x32xf32, #tpu.memory_space<vmem>>, %arg13: memref<1x32xf32, #tpu.memory_space<vmem>>, %arg14: memref<1x4x32xf32, #tpu.memory_space<vmem>>, %arg15: memref<1x2x2x4x4xf32, #tpu.memory_space<vmem>>) attributes {dimension_semantics = [#tpu.dimension_semantics<parallel>], iteration_bounds = array<i64: 4>, scalar_prefetch = 0 : i64, scratch_operands = 0 : i64, tpu.core_type = #tpu.core_type<tc>, window_params = [{transform_indices = @transform_0, window_bounds = array<i64: 1, 4, 32>}, {transform_indices = @transform_1, window_bounds = array<i64: 1, 4, 32>}, {transform_indices = @transform_2, window_bounds = array<i64: 1, 4, 32>}, {pipeline_mode = #tpu.pipeline_mode<synchronous>, transform_indices = @transform_3, window_bounds = array<i64: 2, 32, 16>}, {pipeline_mode = #tpu.pipeline_mode<synchronous>, transform_indices = @transform_4, window_bounds = array<i64: 2, 32, 16>}, {pipeline_mode = #tpu.pipeline_mode<synchronous>, transform_indices = @transform_5, window_bounds = array<i64: 2, 32, 16>}, {pipeline_mode = #tpu.pipeline_mode<synchronous>, transform_indices = @transform_6, window_bounds = array<i64: 2, 1, 16>}, {pipeline_mode = #tpu.pipeline_mode<synchronous>, transform_indices = @transform_7, window_bounds = array<i64: 2, 1, 16>}, {pipeline_mode = #tpu.pipeline_mode<synchronous>, transform_indices = @transform_8, window_bounds = array<i64: 2, 1, 16>}, {pipeline_mode = #tpu.pipeline_mode<synchronous>, transform_indices = @transform_9, window_bounds = array<i64: 2, 16, 32>}, {pipeline_mode = #tpu.pipeline_mode<synchronous>, transform_indices = @transform_10, window_bounds = array<i64: 1, 32>}, {pipeline_mode = #tpu.pipeline_mode<synchronous>, transform_indices = @transform_11, window_bounds = array<i64: 1, 32>}, {pipeline_mode = #tpu.pipeline_mode<synchronous>, transform_indices = @transform_12, window_bounds = array<i64: 1, 32>}, {transform_indices = @transform_13, window_bounds = array<i64: 1, 4, 32>}, {transform_indices = @transform_14, window_bounds = array<i64: 1, 2, 2, 4, 4>}]} {
    %c0 = arith.constant 0 : index
    %c0_0 = arith.constant 0 : index
    %c0_1 = arith.constant 0 : index
    %0 = vector.load %arg1[%c0, %c0_0, %c0_1] : memref<1x4x32xf32, #tpu.memory_space<vmem>>, vector<1x4x32xf32>
    %1 = vector.shape_cast %0 : vector<1x4x32xf32> to vector<4x32xf32>
    %2 = arith.truncf %1 : vector<4x32xf32> to vector<4x32xbf16>
    %c0_2 = arith.constant 0 : index
    %c0_3 = arith.constant 0 : index
    %c0_4 = arith.constant 0 : index
    %3 = vector.load %arg2[%c0_2, %c0_3, %c0_4] : memref<1x4x32xf32, #tpu.memory_space<vmem>>, vector<1x4x32xf32>
    %4 = vector.shape_cast %3 : vector<1x4x32xf32> to vector<4x32xf32>
    %5 = arith.truncf %4 : vector<4x32xf32> to vector<4x32xbf16>
    %c0_5 = arith.constant 0 : index
    %c0_6 = arith.constant 0 : index
    %c0_7 = arith.constant 0 : index
    %6 = vector.load %arg3[%c0_5, %c0_6, %c0_7] : memref<1x4x32xf32, #tpu.memory_space<vmem>>, vector<1x4x32xf32>
    %7 = vector.shape_cast %6 : vector<1x4x32xf32> to vector<4x32xf32>
    %8 = arith.truncf %7 : vector<4x32xf32> to vector<4x32xbf16>
    %c0_8 = arith.constant 0 : index
    %c0_9 = arith.constant 0 : index
    %c0_10 = arith.constant 0 : index
    %9 = vector.load %arg4[%c0_8, %c0_9, %c0_10] : memref<2x32x16xbf16, #tpu.memory_space<vmem>>, vector<1x32x16xbf16>
    %10 = vector.shape_cast %9 : vector<1x32x16xbf16> to vector<32x16xbf16>
    %cst = arith.constant dense<0.000000e+00> : vector<4x16xf32>
    %11 = tpu.matmul %2, %10, %cst {dimension_numbers = #tpu.dot_dimension_numbers<[1], [0], [0], [1], [0, 0, 1, 1], [], []>} : vector<4x32xbf16>, vector<32x16xbf16>, vector<4x16xf32> -> vector<4x16xf32>
    %c0_11 = arith.constant 0 : index
    %c0_12 = arith.constant 0 : index
    %c0_13 = arith.constant 0 : index
    %12 = vector.load %arg7[%c0_11, %c0_12, %c0_13] : memref<2x1x16xf32, #tpu.memory_space<vmem>>, vector<1x1x16xf32>
    %13 = vector.shape_cast %12 : vector<1x1x16xf32> to vector<1x16xf32>
    %14 = vector.broadcast %13 : vector<1x16xf32> to vector<4x16xf32>
    %15 = arith.addf %11, %14 : vector<4x16xf32>
    %16 = arith.truncf %15 : vector<4x16xf32> to vector<4x16xbf16>
    %c1 = arith.constant 1 : index
    %c0_14 = arith.constant 0 : index
    %c0_15 = arith.constant 0 : index
    %17 = vector.load %arg4[%c1, %c0_14, %c0_15] : memref<2x32x16xbf16, #tpu.memory_space<vmem>>, vector<1x32x16xbf16>
    %18 = vector.shape_cast %17 : vector<1x32x16xbf16> to vector<32x16xbf16>
    %cst_16 = arith.constant dense<0.000000e+00> : vector<4x16xf32>
    %19 = tpu.matmul %2, %18, %cst_16 {dimension_numbers = #tpu.dot_dimension_numbers<[1], [0], [0], [1], [0, 0, 1, 1], [], []>} : vector<4x32xbf16>, vector<32x16xbf16>, vector<4x16xf32> -> vector<4x16xf32>
    %c1_17 = arith.constant 1 : index
    %c0_18 = arith.constant 0 : index
    %c0_19 = arith.constant 0 : index
    %20 = vector.load %arg7[%c1_17, %c0_18, %c0_19] : memref<2x1x16xf32, #tpu.memory_space<vmem>>, vector<1x1x16xf32>
    %21 = vector.shape_cast %20 : vector<1x1x16xf32> to vector<1x16xf32>
    %22 = vector.broadcast %21 : vector<1x16xf32> to vector<4x16xf32>
    %23 = arith.addf %19, %22 : vector<4x16xf32>
    %24 = arith.truncf %23 : vector<4x16xf32> to vector<4x16xbf16>
    %c0_20 = arith.constant 0 : index
    %c0_21 = arith.constant 0 : index
    %c0_22 = arith.constant 0 : index
    %25 = vector.load %arg5[%c0_20, %c0_21, %c0_22] : memref<2x32x16xbf16, #tpu.memory_space<vmem>>, vector<1x32x16xbf16>
    %26 = vector.shape_cast %25 : vector<1x32x16xbf16> to vector<32x16xbf16>
    %cst_23 = arith.constant dense<0.000000e+00> : vector<4x16xf32>
    %27 = tpu.matmul %5, %26, %cst_23 {dimension_numbers = #tpu.dot_dimension_numbers<[1], [0], [0], [1], [0, 0, 1, 1], [], []>} : vector<4x32xbf16>, vector<32x16xbf16>, vector<4x16xf32> -> vector<4x16xf32>
    %c0_24 = arith.constant 0 : index
    %c0_25 = arith.constant 0 : index
    %c0_26 = arith.constant 0 : index
    %28 = vector.load %arg8[%c0_24, %c0_25, %c0_26] : memref<2x1x16xf32, #tpu.memory_space<vmem>>, vector<1x1x16xf32>
    %29 = vector.shape_cast %28 : vector<1x1x16xf32> to vector<1x16xf32>
    %30 = vector.broadcast %29 : vector<1x16xf32> to vector<4x16xf32>
    %31 = arith.addf %27, %30 : vector<4x16xf32>
    %32 = arith.truncf %31 : vector<4x16xf32> to vector<4x16xbf16>
    %c1_27 = arith.constant 1 : index
    %c0_28 = arith.constant 0 : index
    %c0_29 = arith.constant 0 : index
    %33 = vector.load %arg5[%c1_27, %c0_28, %c0_29] : memref<2x32x16xbf16, #tpu.memory_space<vmem>>, vector<1x32x16xbf16>
    %34 = vector.shape_cast %33 : vector<1x32x16xbf16> to vector<32x16xbf16>
    %cst_30 = arith.constant dense<0.000000e+00> : vector<4x16xf32>
    %35 = tpu.matmul %5, %34, %cst_30 {dimension_numbers = #tpu.dot_dimension_numbers<[1], [0], [0], [1], [0, 0, 1, 1], [], []>} : vector<4x32xbf16>, vector<32x16xbf16>, vector<4x16xf32> -> vector<4x16xf32>
    %c1_31 = arith.constant 1 : index
    %c0_32 = arith.constant 0 : index
    %c0_33 = arith.constant 0 : index
    %36 = vector.load %arg8[%c1_31, %c0_32, %c0_33] : memref<2x1x16xf32, #tpu.memory_space<vmem>>, vector<1x1x16xf32>
    %37 = vector.shape_cast %36 : vector<1x1x16xf32> to vector<1x16xf32>
    %38 = vector.broadcast %37 : vector<1x16xf32> to vector<4x16xf32>
    %39 = arith.addf %35, %38 : vector<4x16xf32>
    %40 = arith.truncf %39 : vector<4x16xf32> to vector<4x16xbf16>
    %c0_34 = arith.constant 0 : index
    %c0_35 = arith.constant 0 : index
    %c0_36 = arith.constant 0 : index
    %41 = vector.load %arg6[%c0_34, %c0_35, %c0_36] : memref<2x32x16xbf16, #tpu.memory_space<vmem>>, vector<1x32x16xbf16>
    %42 = vector.shape_cast %41 : vector<1x32x16xbf16> to vector<32x16xbf16>
    %cst_37 = arith.constant dense<0.000000e+00> : vector<4x16xf32>
    %43 = tpu.matmul %8, %42, %cst_37 {dimension_numbers = #tpu.dot_dimension_numbers<[1], [0], [0], [1], [0, 0, 1, 1], [], []>} : vector<4x32xbf16>, vector<32x16xbf16>, vector<4x16xf32> -> vector<4x16xf32>
    %c0_38 = arith.constant 0 : index
    %c0_39 = arith.constant 0 : index
    %c0_40 = arith.constant 0 : index
    %44 = vector.load %arg9[%c0_38, %c0_39, %c0_40] : memref<2x1x16xf32, #tpu.memory_space<vmem>>, vector<1x1x16xf32>
    %45 = vector.shape_cast %44 : vector<1x1x16xf32> to vector<1x16xf32>
    %46 = vector.broadcast %45 : vector<1x16xf32> to vector<4x16xf32>
    %47 = arith.addf %43, %46 : vector<4x16xf32>
    %48 = arith.truncf %47 : vector<4x16xf32> to vector<4x16xbf16>
    %c1_41 = arith.constant 1 : index
    %c0_42 = arith.constant 0 : index
    %c0_43 = arith.constant 0 : index
    %49 = vector.load %arg6[%c1_41, %c0_42, %c0_43] : memref<2x32x16xbf16, #tpu.memory_space<vmem>>, vector<1x32x16xbf16>
    %50 = vector.shape_cast %49 : vector<1x32x16xbf16> to vector<32x16xbf16>
    %cst_44 = arith.constant dense<0.000000e+00> : vector<4x16xf32>
    %51 = tpu.matmul %8, %50, %cst_44 {dimension_numbers = #tpu.dot_dimension_numbers<[1], [0], [0], [1], [0, 0, 1, 1], [], []>} : vector<4x32xbf16>, vector<32x16xbf16>, vector<4x16xf32> -> vector<4x16xf32>
    %c1_45 = arith.constant 1 : index
    %c0_46 = arith.constant 0 : index
    %c0_47 = arith.constant 0 : index
    %52 = vector.load %arg9[%c1_45, %c0_46, %c0_47] : memref<2x1x16xf32, #tpu.memory_space<vmem>>, vector<1x1x16xf32>
    %53 = vector.shape_cast %52 : vector<1x1x16xf32> to vector<1x16xf32>
    %54 = vector.broadcast %53 : vector<1x16xf32> to vector<4x16xf32>
    %55 = arith.addf %51, %54 : vector<4x16xf32>
    %56 = arith.truncf %55 : vector<4x16xf32> to vector<4x16xbf16>
    %cst_48 = arith.constant 0.000000e+00 : f32
    %57 = vector.broadcast %cst_48 : f32 to vector<4x32xf32>
    %cst_49 = arith.constant dense<0.000000e+00> : vector<4x4xf32>
    %58 = tpu.matmul %16, %32, %cst_49 {dimension_numbers = #tpu.dot_dimension_numbers<[1], [1], [0], [0], [0, 0, 1, 0], [], []>} : vector<4x16xbf16>, vector<4x16xbf16>, vector<4x4xf32> -> vector<4x4xf32>
    %cst_50 = arith.constant dense<0.000000e+00> : vector<4x4xf32>
    %59 = tpu.matmul %16, %40, %cst_50 {dimension_numbers = #tpu.dot_dimension_numbers<[1], [1], [0], [0], [0, 0, 1, 0], [], []>} : vector<4x16xbf16>, vector<4x16xbf16>, vector<4x4xf32> -> vector<4x4xf32>
    %cst_51 = arith.constant dense<0xFF800000> : vector<4xf32>
    %60 = vector.multi_reduction <maximumf>, %58, %cst_51 [1] : vector<4x4xf32> to vector<4xf32>
    %61 = vector.shape_cast %60 : vector<4xf32> to vector<4x1xf32>
    %cst_52 = arith.constant dense<0xFF800000> : vector<4xf32>
    %62 = vector.multi_reduction <maximumf>, %59, %cst_52 [1] : vector<4x4xf32> to vector<4xf32>
    %63 = vector.shape_cast %62 : vector<4xf32> to vector<4x1xf32>
    %64 = arith.maximumf %61, %63 : vector<4x1xf32>
    %65 = vector.broadcast %64 : vector<4x1xf32> to vector<4x4xf32>
    %66 = arith.subf %58, %65 : vector<4x4xf32>
    %67 = math.exp %66 : vector<4x4xf32>
    %68 = vector.broadcast %64 : vector<4x1xf32> to vector<4x4xf32>
    %69 = arith.subf %59, %68 : vector<4x4xf32>
    %70 = math.exp %69 : vector<4x4xf32>
    %cst_53 = arith.constant dense<0.000000e+00> : vector<4xf32>
    %71 = vector.multi_reduction <add>, %67, %cst_53 [1] : vector<4x4xf32> to vector<4xf32>
    %72 = vector.shape_cast %71 : vector<4xf32> to vector<4x1xf32>
    %cst_54 = arith.constant dense<0.000000e+00> : vector<4xf32>
    %73 = vector.multi_reduction <add>, %70, %cst_54 [1] : vector<4x4xf32> to vector<4xf32>
    %74 = vector.shape_cast %73 : vector<4xf32> to vector<4x1xf32>
    %75 = arith.addf %72, %74 : vector<4x1xf32>
    %cst_55 = arith.constant 1.000000e+00 : f32
    %76 = vector.broadcast %cst_55 : f32 to vector<4x1xf32>
    %77 = arith.divf %76, %75 : vector<4x1xf32>
    %cst_56 = arith.constant 0.000000e+00 : f32
    %78 = vector.broadcast %cst_56 : f32 to vector<4x16xf32>
    %79 = vector.broadcast %77 : vector<4x1xf32> to vector<4x4xf32>
    %80 = arith.mulf %67, %79 : vector<4x4xf32>
    %c0_57 = arith.constant 0 : index
    %c0_58 = arith.constant 0 : index
    %c0_59 = arith.constant 0 : index
    %c0_60 = arith.constant 0 : index
    %c0_61 = arith.constant 0 : index
    %81 = vector.load %arg15[%c0_57, %c0_58, %c0_59, %c0_60, %c0_61] : memref<1x2x2x4x4xf32, #tpu.memory_space<vmem>>, vector<1x1x1x4x4xf32>
    %82 = vector.shape_cast %81 : vector<1x1x1x4x4xf32> to vector<4x4xf32>
    %83 = vector.shape_cast %80 : vector<4x4xf32> to vector<1x1x1x4x4xf32>
    tpu.vector_store %arg15[%c0_57, %c0_58, %c0_59, %c0_60, %c0_61], %83 {strides = array<i32>} : memref<1x2x2x4x4xf32, #tpu.memory_space<vmem>>, vector<1x1x1x4x4xf32>,
    %84 = arith.truncf %80 : vector<4x4xf32> to vector<4x4xbf16>
    %cst_62 = arith.constant dense<0.000000e+00> : vector<4x16xf32>
    %85 = tpu.matmul %84, %48, %cst_62 {dimension_numbers = #tpu.dot_dimension_numbers<[1], [0], [0], [1], [0, 0, 1, 1], [], []>} : vector<4x4xbf16>, vector<4x16xbf16>, vector<4x16xf32> -> vector<4x16xf32>
    %86 = arith.addf %78, %85 : vector<4x16xf32>
    %87 = vector.broadcast %77 : vector<4x1xf32> to vector<4x4xf32>
    %88 = arith.mulf %70, %87 : vector<4x4xf32>
    %c0_63 = arith.constant 0 : index
    %c0_64 = arith.constant 0 : index
    %c1_65 = arith.constant 1 : index
    %c0_66 = arith.constant 0 : index
    %c0_67 = arith.constant 0 : index
    %89 = vector.load %arg15[%c0_63, %c0_64, %c1_65, %c0_66, %c0_67] : memref<1x2x2x4x4xf32, #tpu.memory_space<vmem>>, vector<1x1x1x4x4xf32>
    %90 = vector.shape_cast %89 : vector<1x1x1x4x4xf32> to vector<4x4xf32>
    %91 = vector.shape_cast %88 : vector<4x4xf32> to vector<1x1x1x4x4xf32>
    tpu.vector_store %arg15[%c0_63, %c0_64, %c1_65, %c0_66, %c0_67], %91 {strides = array<i32>} : memref<1x2x2x4x4xf32, #tpu.memory_space<vmem>>, vector<1x1x1x4x4xf32>,
    %92 = arith.truncf %88 : vector<4x4xf32> to vector<4x4xbf16>
    %cst_68 = arith.constant dense<0.000000e+00> : vector<4x16xf32>
    %93 = tpu.matmul %92, %56, %cst_68 {dimension_numbers = #tpu.dot_dimension_numbers<[1], [0], [0], [1], [0, 0, 1, 1], [], []>} : vector<4x4xbf16>, vector<4x16xbf16>, vector<4x16xf32> -> vector<4x16xf32>
    %94 = arith.addf %86, %93 : vector<4x16xf32>
    %95 = arith.truncf %94 : vector<4x16xf32> to vector<4x16xbf16>
    %c0_69 = arith.constant 0 : index
    %c0_70 = arith.constant 0 : index
    %c0_71 = arith.constant 0 : index
    %96 = vector.load %arg10[%c0_69, %c0_70, %c0_71] : memref<2x16x32xbf16, #tpu.memory_space<vmem>>, vector<1x16x32xbf16>
    %97 = vector.shape_cast %96 : vector<1x16x32xbf16> to vector<16x32xbf16>
    %cst_72 = arith.constant dense<0.000000e+00> : vector<4x32xf32>
    %98 = tpu.matmul %95, %97, %cst_72 {dimension_numbers = #tpu.dot_dimension_numbers<[1], [0], [0], [1], [0, 0, 1, 1], [], []>} : vector<4x16xbf16>, vector<16x32xbf16>, vector<4x32xf32> -> vector<4x32xf32>
    %99 = arith.addf %57, %98 : vector<4x32xf32>
    %cst_73 = arith.constant dense<0.000000e+00> : vector<4x4xf32>
    %100 = tpu.matmul %24, %32, %cst_73 {dimension_numbers = #tpu.dot_dimension_numbers<[1], [1], [0], [0], [0, 0, 1, 0], [], []>} : vector<4x16xbf16>, vector<4x16xbf16>, vector<4x4xf32> -> vector<4x4xf32>
    %cst_74 = arith.constant dense<0.000000e+00> : vector<4x4xf32>
    %101 = tpu.matmul %24, %40, %cst_74 {dimension_numbers = #tpu.dot_dimension_numbers<[1], [1], [0], [0], [0, 0, 1, 0], [], []>} : vector<4x16xbf16>, vector<4x16xbf16>, vector<4x4xf32> -> vector<4x4xf32>
    %cst_75 = arith.constant dense<0xFF800000> : vector<4xf32>
    %102 = vector.multi_reduction <maximumf>, %100, %cst_75 [1] : vector<4x4xf32> to vector<4xf32>
    %103 = vector.shape_cast %102 : vector<4xf32> to vector<4x1xf32>
    %cst_76 = arith.constant dense<0xFF800000> : vector<4xf32>
    %104 = vector.multi_reduction <maximumf>, %101, %cst_76 [1] : vector<4x4xf32> to vector<4xf32>
    %105 = vector.shape_cast %104 : vector<4xf32> to vector<4x1xf32>
    %106 = arith.maximumf %103, %105 : vector<4x1xf32>
    %107 = vector.broadcast %106 : vector<4x1xf32> to vector<4x4xf32>
    %108 = arith.subf %100, %107 : vector<4x4xf32>
    %109 = math.exp %108 : vector<4x4xf32>
    %110 = vector.broadcast %106 : vector<4x1xf32> to vector<4x4xf32>
    %111 = arith.subf %101, %110 : vector<4x4xf32>
    %112 = math.exp %111 : vector<4x4xf32>
    %cst_77 = arith.constant dense<0.000000e+00> : vector<4xf32>
    %113 = vector.multi_reduction <add>, %109, %cst_77 [1] : vector<4x4xf32> to vector<4xf32>
    %114 = vector.shape_cast %113 : vector<4xf32> to vector<4x1xf32>
    %cst_78 = arith.constant dense<0.000000e+00> : vector<4xf32>
    %115 = vector.multi_reduction <add>, %112, %cst_78 [1] : vector<4x4xf32> to vector<4xf32>
    %116 = vector.shape_cast %115 : vector<4xf32> to vector<4x1xf32>
    %117 = arith.addf %114, %116 : vector<4x1xf32>
    %cst_79 = arith.constant 1.000000e+00 : f32
    %118 = vector.broadcast %cst_79 : f32 to vector<4x1xf32>
    %119 = arith.divf %118, %117 : vector<4x1xf32>
    %cst_80 = arith.constant 0.000000e+00 : f32
    %120 = vector.broadcast %cst_80 : f32 to vector<4x16xf32>
    %121 = vector.broadcast %119 : vector<4x1xf32> to vector<4x4xf32>
    %122 = arith.mulf %109, %121 : vector<4x4xf32>
    %c0_81 = arith.constant 0 : index
    %c1_82 = arith.constant 1 : index
    %c0_83 = arith.constant 0 : index
    %c0_84 = arith.constant 0 : index
    %c0_85 = arith.constant 0 : index
    %123 = vector.load %arg15[%c0_81, %c1_82, %c0_83, %c0_84, %c0_85] : memref<1x2x2x4x4xf32, #tpu.memory_space<vmem>>, vector<1x1x1x4x4xf32>
    %124 = vector.shape_cast %123 : vector<1x1x1x4x4xf32> to vector<4x4xf32>
    %125 = vector.shape_cast %122 : vector<4x4xf32> to vector<1x1x1x4x4xf32>
    tpu.vector_store %arg15[%c0_81, %c1_82, %c0_83, %c0_84, %c0_85], %125 {strides = array<i32>} : memref<1x2x2x4x4xf32, #tpu.memory_space<vmem>>, vector<1x1x1x4x4xf32>,
    %126 = arith.truncf %122 : vector<4x4xf32> to vector<4x4xbf16>
    %cst_86 = arith.constant dense<0.000000e+00> : vector<4x16xf32>
    %127 = tpu.matmul %126, %48, %cst_86 {dimension_numbers = #tpu.dot_dimension_numbers<[1], [0], [0], [1], [0, 0, 1, 1], [], []>} : vector<4x4xbf16>, vector<4x16xbf16>, vector<4x16xf32> -> vector<4x16xf32>
    %128 = arith.addf %120, %127 : vector<4x16xf32>
    %129 = vector.broadcast %119 : vector<4x1xf32> to vector<4x4xf32>
    %130 = arith.mulf %112, %129 : vector<4x4xf32>
    %c0_87 = arith.constant 0 : index
    %c1_88 = arith.constant 1 : index
    %c1_89 = arith.constant 1 : index
    %c0_90 = arith.constant 0 : index
    %c0_91 = arith.constant 0 : index
    %131 = vector.load %arg15[%c0_87, %c1_88, %c1_89, %c0_90, %c0_91] : memref<1x2x2x4x4xf32, #tpu.memory_space<vmem>>, vector<1x1x1x4x4xf32>
    %132 = vector.shape_cast %131 : vector<1x1x1x4x4xf32> to vector<4x4xf32>
    %133 = vector.shape_cast %130 : vector<4x4xf32> to vector<1x1x1x4x4xf32>
    tpu.vector_store %arg15[%c0_87, %c1_88, %c1_89, %c0_90, %c0_91], %133 {strides = array<i32>} : memref<1x2x2x4x4xf32, #tpu.memory_space<vmem>>, vector<1x1x1x4x4xf32>,
    %134 = arith.truncf %130 : vector<4x4xf32> to vector<4x4xbf16>
    %cst_92 = arith.constant dense<0.000000e+00> : vector<4x16xf32>
    %135 = tpu.matmul %134, %56, %cst_92 {dimension_numbers = #tpu.dot_dimension_numbers<[1], [0], [0], [1], [0, 0, 1, 1], [], []>} : vector<4x4xbf16>, vector<4x16xbf16>, vector<4x16xf32> -> vector<4x16xf32>
    %136 = arith.addf %128, %135 : vector<4x16xf32>
    %137 = arith.truncf %136 : vector<4x16xf32> to vector<4x16xbf16>
    %c1_93 = arith.constant 1 : index
    %c0_94 = arith.constant 0 : index
    %c0_95 = arith.constant 0 : index
    %138 = vector.load %arg10[%c1_93, %c0_94, %c0_95] : memref<2x16x32xbf16, #tpu.memory_space<vmem>>, vector<1x16x32xbf16>
    %139 = vector.shape_cast %138 : vector<1x16x32xbf16> to vector<16x32xbf16>
    %cst_96 = arith.constant dense<0.000000e+00> : vector<4x32xf32>
    %140 = tpu.matmul %137, %139, %cst_96 {dimension_numbers = #tpu.dot_dimension_numbers<[1], [0], [0], [1], [0, 0, 1, 1], [], []>} : vector<4x16xbf16>, vector<16x32xbf16>, vector<4x32xf32> -> vector<4x32xf32>
    %141 = arith.addf %99, %140 : vector<4x32xf32>
    %c0_97 = arith.constant 0 : index
    %c0_98 = arith.constant 0 : index
    %142 = vector.load %arg11[%c0_97, %c0_98] : memref<1x32xf32, #tpu.memory_space<vmem>>, vector<1x32xf32>
    %143 = vector.broadcast %142 : vector<1x32xf32> to vector<4x32xf32>
    %144 = arith.addf %141, %143 : vector<4x32xf32>
    %cst_99 = arith.constant 0.000000e+00 : f32
    %145 = vector.broadcast %cst_99 : f32 to vector<4x32xf32>
    %146 = arith.maximumf %144, %145 : vector<4x32xf32>
    %147 = arith.addf %1, %146 : vector<4x32xf32>
    %cst_100 = arith.constant dense<0.000000e+00> : vector<4xf32>
    %148 = vector.multi_reduction <add>, %147, %cst_100 [1] : vector<4x32xf32> to vector<4xf32>
    %149 = vector.shape_cast %148 : vector<4xf32> to vector<4x1xf32>
    %cst_101 = arith.constant 3.200000e+01 : f32
    %150 = vector.broadcast %cst_101 : f32 to vector<4x1xf32>
    %151 = arith.divf %149, %150 : vector<4x1xf32>
    %152 = vector.broadcast %151 : vector<4x1xf32> to vector<4x32xf32>
    %153 = arith.subf %147, %152 : vector<4x32xf32>
    %154 = arith.mulf %153, %153 : vector<4x32xf32>
    %cst_102 = arith.constant dense<0.000000e+00> : vector<4xf32>
    %155 = vector.multi_reduction <add>, %154, %cst_102 [1] : vector<4x32xf32> to vector<4xf32>
    %156 = vector.shape_cast %155 : vector<4xf32> to vector<4x1xf32>
    %cst_103 = arith.constant 3.200000e+01 : f32
    %157 = vector.broadcast %cst_103 : f32 to vector<4x1xf32>
    %158 = arith.divf %156, %157 : vector<4x1xf32>
    %cst_104 = arith.constant 9.99999974E-6 : f32
    %159 = vector.broadcast %cst_104 : f32 to vector<4x1xf32>
    %160 = arith.addf %158, %159 : vector<4x1xf32>
    %161 = math.rsqrt %160 : vector<4x1xf32>
    %162 = vector.broadcast %161 : vector<4x1xf32> to vector<4x32xf32>
    %163 = arith.mulf %153, %162 : vector<4x32xf32>
    %c0_105 = arith.constant 0 : index
    %c0_106 = arith.constant 0 : index
    %164 = vector.load %arg12[%c0_105, %c0_106] : memref<1x32xf32, #tpu.memory_space<vmem>>, vector<1x32xf32>
    %165 = vector.broadcast %164 : vector<1x32xf32> to vector<4x32xf32>
    %166 = arith.mulf %163, %165 : vector<4x32xf32>
    %c0_107 = arith.constant 0 : index
    %c0_108 = arith.constant 0 : index
    %167 = vector.load %arg13[%c0_107, %c0_108] : memref<1x32xf32, #tpu.memory_space<vmem>>, vector<1x32xf32>
    %168 = vector.broadcast %167 : vector<1x32xf32> to vector<4x32xf32>
    %169 = arith.addf %166, %168 : vector<4x32xf32>
    %c0_109 = arith.constant 0 : index
    %c0_110 = arith.constant 0 : index
    %c0_111 = arith.constant 0 : index
    %170 = vector.load %arg14[%c0_109, %c0_110, %c0_111] : memref<1x4x32xf32, #tpu.memory_space<vmem>>, vector<1x4x32xf32>
    %171 = vector.shape_cast %170 : vector<1x4x32xf32> to vector<4x32xf32>
    %172 = vector.shape_cast %169 : vector<4x32xf32> to vector<1x4x32xf32>
    tpu.vector_store %arg14[%c0_109, %c0_110, %c0_111], %172 {strides = array<i32>} : memref<1x4x32xf32, #tpu.memory_space<vmem>>, vector<1x4x32xf32>,
    return
  }
  func.func @transform_0(%arg0: i32) -> (i32, i32, i32) {
    %c0_i32 = arith.constant 0 : i32
    %c0_i32_0 = arith.constant 0 : i32
    %c0_i32_1 = arith.constant 0 : i32
    return %arg0, %c0_i32, %c0_i32_0 : i32, i32, i32
  }
  func.func @transform_1(%arg0: i32) -> (i32, i32, i32) {
    %c0_i32 = arith.constant 0 : i32
    %c0_i32_0 = arith.constant 0 : i32
    %c0_i32_1 = arith.constant 0 : i32
    return %arg0, %c0_i32, %c0_i32_0 : i32, i32, i32
  }
  func.func @transform_2(%arg0: i32) -> (i32, i32, i32) {
    %c0_i32 = arith.constant 0 : i32
    %c0_i32_0 = arith.constant 0 : i32
    %c0_i32_1 = arith.constant 0 : i32
    return %arg0, %c0_i32, %c0_i32_0 : i32, i32, i32
  }
  func.func @transform_3(%arg0: i32) -> (i32, i32, i32) {
    %c0_i32 = arith.constant 0 : i32
    %c0_i32_0 = arith.constant 0 : i32
    %c0_i32_1 = arith.constant 0 : i32
    %c0_i32_2 = arith.constant 0 : i32
    return %c0_i32, %c0_i32_0, %c0_i32_1 : i32, i32, i32
  }
  func.func @transform_4(%arg0: i32) -> (i32, i32, i32) {
    %c0_i32 = arith.constant 0 : i32
    %c0_i32_0 = arith.constant 0 : i32
    %c0_i32_1 = arith.constant 0 : i32
    %c0_i32_2 = arith.constant 0 : i32
    return %c0_i32, %c0_i32_0, %c0_i32_1 : i32, i32, i32
  }
  func.func @transform_5(%arg0: i32) -> (i32, i32, i32) {
    %c0_i32 = arith.constant 0 : i32
    %c0_i32_0 = arith.constant 0 : i32
    %c0_i32_1 = arith.constant 0 : i32
    %c0_i32_2 = arith.constant 0 : i32
    return %c0_i32, %c0_i32_0, %c0_i32_1 : i32, i32, i32
  }
  func.func @transform_6(%arg0: i32) -> (i32, i32, i32) {
    %c0_i32 = arith.constant 0 : i32
    %c0_i32_0 = arith.constant 0 : i32
    %c0_i32_1 = arith.constant 0 : i32
    %c0_i32_2 = arith.constant 0 : i32
    return %c0_i32, %c0_i32_0, %c0_i32_1 : i32, i32, i32
  }
  func.func @transform_7(%arg0: i32) -> (i32, i32, i32) {
    %c0_i32 = arith.constant 0 : i32
    %c0_i32_0 = arith.constant 0 : i32
    %c0_i32_1 = arith.constant 0 : i32
    %c0_i32_2 = arith.constant 0 : i32
    return %c0_i32, %c0_i32_0, %c0_i32_1 : i32, i32, i32
  }
  func.func @transform_8(%arg0: i32) -> (i32, i32, i32) {
    %c0_i32 = arith.constant 0 : i32
    %c0_i32_0 = arith.constant 0 : i32
    %c0_i32_1 = arith.constant 0 : i32
    %c0_i32_2 = arith.constant 0 : i32
    return %c0_i32, %c0_i32_0, %c0_i32_1 : i32, i32, i32
  }
  func.func @transform_9(%arg0: i32) -> (i32, i32, i32) {
    %c0_i32 = arith.constant 0 : i32
    %c0_i32_0 = arith.constant 0 : i32
    %c0_i32_1 = arith.constant 0 : i32
    %c0_i32_2 = arith.constant 0 : i32
    return %c0_i32, %c0_i32_0, %c0_i32_1 : i32, i32, i32
  }
  func.func @transform_10(%arg0: i32) -> (i32, i32) {
    %c0_i32 = arith.constant 0 : i32
    %c0_i32_0 = arith.constant 0 : i32
    %c0_i32_1 = arith.constant 0 : i32
    return %c0_i32, %c0_i32_0 : i32, i32
  }
  func.func @transform_11(%arg0: i32) -> (i32, i32) {
    %c0_i32 = arith.constant 0 : i32
    %c0_i32_0 = arith.constant 0 : i32
    %c0_i32_1 = arith.constant 0 : i32
    return %c0_i32, %c0_i32_0 : i32, i32
  }
  func.func @transform_12(%arg0: i32) -> (i32, i32) {
    %c0_i32 = arith.constant 0 : i32
    %c0_i32_0 = arith.constant 0 : i32
    %c0_i32_1 = arith.constant 0 : i32
    return %c0_i32, %c0_i32_0 : i32, i32
  }
  func.func @transform_13(%arg0: i32) -> (i32, i32, i32) {
    %c0_i32 = arith.constant 0 : i32
    %c0_i32_0 = arith.constant 0 : i32
    %c0_i32_1 = arith.constant 0 : i32
    return %arg0, %c0_i32, %c0_i32_0 : i32, i32, i32
  }
  func.func @transform_14(%arg0: i32) -> (i32, i32, i32, i32, i32) {
    %c0_i32 = arith.constant 0 : i32
    %c0_i32_0 = arith.constant 0 : i32
    %c0_i32_1 = arith.constant 0 : i32
    %c0_i32_2 = arith.constant 0 : i32
    %c0_i32_3 = arith.constant 0 : i32
    return %arg0, %c0_i32, %c0_i32_0, %c0_i32_1, %c0_i32_2 : i32, i32, i32, i32, i32
  }
}

</mosaic_0001>

<llo_original>
// kernel: tpu_custom_call.1
$region0: #{tpu_custom_call.1}
  #allocation0 [shape = 'u32[]', space=smem, size = 0x4, offset = 0x4, fixed_abs, tag = 'smem constant byte address 0x4 - core index']
  #allocation1 [shape = 'u32[144,128]{1,0:T(1,128)}', space=vmem, size = 0x12000, scoped, tag = 'internal scratch']
  %s0 = inlined_call_operand.vmem [shape: f32[4,4,32], index: 0, kind: input, shape index: {}]
  %s1 = inlined_call_operand.vmem [shape: f32[4,4,32], index: 1, kind: input, shape index: {}]
  %s2 = inlined_call_operand.vmem [shape: f32[4,4,32], index: 2, kind: input, shape index: {}]
  %s3 = inlined_call_operand.vmem [shape: bf16[2,32,16], index: 3, kind: input, shape index: {}]
  %s4 = inlined_call_operand.vmem [shape: bf16[2,32,16], index: 4, kind: input, shape index: {}]
  %s5 = inlined_call_operand.vmem [shape: bf16[2,32,16], index: 5, kind: input, shape index: {}]
  %s6 = inlined_call_operand.vmem [shape: f32[2,1,16], index: 6, kind: input, shape index: {}]
  %s7 = inlined_call_operand.vmem [shape: f32[2,1,16], index: 7, kind: input, shape index: {}]
  %s8 = inlined_call_operand.vmem [shape: f32[2,1,16], index: 8, kind: input, shape index: {}]
  %s9 = inlined_call_operand.vmem [shape: bf16[2,16,32], index: 9, kind: input, shape index: {}]
  %s10 = inlined_call_operand.vmem [shape: f32[1,32], index: 10, kind: input, shape index: {}]
  %s11 = inlined_call_operand.vmem [shape: f32[1,32], index: 11, kind: input, shape index: {}]
  %s12 = inlined_call_operand.vmem [shape: f32[1,32], index: 12, kind: input, shape index: {}]
  %s13 = inlined_call_operand.hbm [shape: f32[4,4,32], index: 13, kind: output, shape index: {0}]
  %s14 = inlined_call_operand.hbm [shape: f32[4,2,2,4,4], index: 14, kind: output, shape index: {1}]
  %15 = xla_tuple %s13, %s14
  %s16 = sld [smem:[#allocation0]]
  $region93: #{tpu_custom_call.1} parent=0
    _
  %s18 = ssub.s32 1, %s16
  %s19 = scalar_select 0, %s18, %s16
  $region1: #{tpu_custom_call.1} parent=0
    #allocation2 [shape = 'u8[4096]{0}', space=vmem, size = 0x1000, scoped, tag = 'output window, operand 0']
    #allocation3 [shape = 's32[2]{0}', space=sflag, size = 0x8, scoped, tag = 'scoped memory for tpu_custom_call.1']
    #allocation4 [shape = 'u8[16384]{0}', space=vmem, size = 0x4000, scoped, tag = 'output window, operand 1']
    #allocation5 [shape = 's32[2]{0}', space=sflag, size = 0x8, scoped, tag = 'scoped memory for tpu_custom_call.1']
    %20 = vsyncpa [#allocation3], 0
    %s21 = scalar_lea.sflag [#allocation3], 1
    %22 = vsyncpa %s21, 0
    %23 = vsyncpa [#allocation5], 0
    %s24 = scalar_lea.sflag [#allocation5], 1
    %25 = vsyncpa %s24, 0
    loop: start=0, step=1, limit=6
    $region2: #{tpu_custom_call.1} parent=1 // loop_pre_header
      _
    $region3: #{tpu_custom_call.1} parent=1 // loop_header
      %s27 = sphi 0, %s31
      %p28 = scmp.ge.s32.totalorder %s27, 6
      %s37 = sphi 0, %s39
      %s40 = sphi 0, %s37
      %s41 = sphi 0, %s40
      %s57 = sphi 0, %s41
      %s63 = sphi 0, %s65
      %s66 = sphi 0, %s63
      %s67 = sphi 0, %s66
      %s83 = sphi 0, %s67
      %s89 = sphi 0, %s91
      %s92 = sphi 0, %s89
      %s93 = sphi 0, %s92
      %s109 = sphi 0, %s93
      %s113 = sphi 0, %s113
      %s115 = sphi 0, %s113
      %s116 = sphi 0, %s115
      %s130 = sphi 0, %s116
      %s134 = sphi 0, %s134
      %s136 = sphi 0, %s134
      %s137 = sphi 0, %s136
      %s151 = sphi 0, %s137
      %s155 = sphi 0, %s155
      %s157 = sphi 0, %s155
      %s158 = sphi 0, %s157
      %s172 = sphi 0, %s158
      %s176 = sphi 0, %s176
      %s178 = sphi 0, %s176
      %s179 = sphi 0, %s178
      %s193 = sphi 0, %s179
      %s197 = sphi 0, %s197
      %s199 = sphi 0, %s197
      %s200 = sphi 0, %s199
      %s214 = sphi 0, %s200
      %s218 = sphi 0, %s218
      %s220 = sphi 0, %s218
      %s221 = sphi 0, %s220
      %s235 = sphi 0, %s221
      %s239 = sphi 0, %s239
      %s241 = sphi 0, %s239
      %s242 = sphi 0, %s241
      %s256 = sphi 0, %s242
      %s260 = sphi 0, %s260
      %s262 = sphi 0, %s260
      %s263 = sphi 0, %s262
      %s277 = sphi 0, %s263
      %s281 = sphi 0, %s281
      %s283 = sphi 0, %s281
      %s284 = sphi 0, %s283
      %s298 = sphi 0, %s284
      %s302 = sphi 0, %s302
      %s304 = sphi 0, %s302
      %s305 = sphi 0, %s304
      %s319 = sphi 0, %s305
      %s325 = sphi 0, %s327
      %s328 = sphi 0, %s325
      %s329 = sphi 0, %s328
      %s345 = sphi 0, %s329
      %s351 = sphi 0, %s353
      %s354 = sphi 0, %s351
      %s355 = sphi 0, %s354
      %s371 = sphi 0, %s355
    $region4: #{tpu_custom_call.1} parent=1 // loop_header_branch
      %30 = sbr.rel (%p28) target = $region8
    $region5: #{tpu_custom_call.1} parent=1 // loop_body
      %s32 = ssub.s32 %s27, 1
      %s33 = ssub.s32 %s27, 2
      %s34 = sadd.s32 %s27, 1
      %s35 = ssub.s32 %s27, %s34
      %p36 = scmp.eq.s32.totalorder %s35, 0
      %s38 = sadd.s32 %s37, 1
      %s39 = scalar_select %p36, %s37, %s38
      %p42 = pneg %p36
      %p43 = scmp.eq.s32.totalorder %s27, 3
      %p44 = por %p42, %p43
      %p45 = scmp.ne.s32.totalorder %s37, %s40
      %p46 = scmp.eq.s32.totalorder %s27, 0
      %p47 = por %p45, %p46
      %p48 = scmp.ne.s32.totalorder %s37, %s40
      %p49 = scmp.eq.s32.totalorder %s32, 3
      %p50 = por %p48, %p49
      %p51 = scmp.ne.s32.totalorder %s40, %s41
      %p52 = scmp.eq.s32.totalorder %s32, 0
      %p53 = por %p51, %p52
      %p54 = scmp.ne.s32.totalorder %s40, %s41
      %p55 = scmp.eq.s32.totalorder %s33, 3
      %p56 = por %p54, %p55
      %p58 = scmp.ne.s32.totalorder %s41, %s57
      %p59 = scmp.eq.s32.totalorder %s33, 0
      %p60 = por %p58, %p59
      %s61 = ssub.s32 %s27, %s34
      %p62 = scmp.eq.s32.totalorder %s61, 0
      %s64 = sadd.s32 %s63, 1
      %s65 = scalar_select %p62, %s63, %s64
      %p68 = pneg %p62
      %p69 = scmp.eq.s32.totalorder %s27, 3
      %p70 = por %p68, %p69
      %p71 = scmp.ne.s32.totalorder %s63, %s66
      %p72 = scmp.eq.s32.totalorder %s27, 0
      %p73 = por %p71, %p72
      %p74 = scmp.ne.s32.totalorder %s63, %s66
      %p75 = scmp.eq.s32.totalorder %s32, 3
      %p76 = por %p74, %p75
      %p77 = scmp.ne.s32.totalorder %s66, %s67
      %p78 = scmp.eq.s32.totalorder %s32, 0
      %p79 = por %p77, %p78
      %p80 = scmp.ne.s32.totalorder %s66, %s67
      %p81 = scmp.eq.s32.totalorder %s33, 3
      %p82 = por %p80, %p81
      %p84 = scmp.ne.s32.totalorder %s67, %s83
      %p85 = scmp.eq.s32.totalorder %s33, 0
      %p86 = por %p84, %p85
      %s87 = ssub.s32 %s27, %s34
      %p88 = scmp.eq.s32.totalorder %s87, 0
      %s90 = sadd.s32 %s89, 1
      %s91 = scalar_select %p88, %s89, %s90
      %p94 = pneg %p88
      %p95 = scmp.eq.s32.totalorder %s27, 3
      %p96 = por %p94, %p95
      %p97 = scmp.ne.s32.totalorder %s89, %s92
      %p98 = scmp.eq.s32.totalorder %s27, 0
      %p99 = por %p97, %p98
      %p100 = scmp.ne.s32.totalorder %s89, %s92
      %p101 = scmp.eq.s32.totalorder %s32, 3
      %p102 = por %p100, %p101
      %p103 = scmp.ne.s32.totalorder %s92, %s93
      %p104 = scmp.eq.s32.totalorder %s32, 0
      %p105 = por %p103, %p104
      %p106 = scmp.ne.s32.totalorder %s92, %s93
      %p107 = scmp.eq.s32.totalorder %s33, 3
      %p108 = por %p106, %p107
      %p110 = scmp.ne.s32.totalorder %s93, %s109
      %p111 = scmp.eq.s32.totalorder %s33, 0
      %p112 = por %p110, %p111
      %s114 = sadd.s32 %s113, 1
      %p117 = scmp.eq.s32.totalorder %s27, 3
      %p118 = scmp.ne.s32.totalorder %s113, %s115
      %p119 = scmp.eq.s32.totalorder %s27, 0
      %p120 = por %p118, %p119
      %p121 = scmp.ne.s32.totalorder %s113, %s115
      %p122 = scmp.eq.s32.totalorder %s32, 3
      %p123 = por %p121, %p122
      %p124 = scmp.ne.s32.totalorder %s115, %s116
      %p125 = scmp.eq.s32.totalorder %s32, 0
      %p126 = por %p124, %p125
      %p127 = scmp.ne.s32.totalorder %s115, %s116
      %p128 = scmp.eq.s32.totalorder %s33, 3
      %p129 = por %p127, %p128
      %p131 = scmp.ne.s32.totalorder %s116, %s130
      %p132 = scmp.eq.s32.totalorder %s33, 0
      %p133 = por %p131, %p132
      %s135 = sadd.s32 %s134, 1
      %p138 = scmp.eq.s32.totalorder %s27, 3
      %p139 = scmp.ne.s32.totalorder %s134, %s136
      %p140 = scmp.eq.s32.totalorder %s27, 0
      %p141 = por %p139, %p140
      %p142 = scmp.ne.s32.totalorder %s134, %s136
      %p143 = scmp.eq.s32.totalorder %s32, 3
      %p144 = por %p142, %p143
      %p145 = scmp.ne.s32.totalorder %s136, %s137
      %p146 = scmp.eq.s32.totalorder %s32, 0
      %p147 = por %p145, %p146
      %p148 = scmp.ne.s32.totalorder %s136, %s137
      %p149 = scmp.eq.s32.totalorder %s33, 3
      %p150 = por %p148, %p149
      %p152 = scmp.ne.s32.totalorder %s137, %s151
      %p153 = scmp.eq.s32.totalorder %s33, 0
      %p154 = por %p152, %p153
      %s156 = sadd.s32 %s155, 1
      %p159 = scmp.eq.s32.totalorder %s27, 3
      %p160 = scmp.ne.s32.totalorder %s155, %s157
      %p161 = scmp.eq.s32.totalorder %s27, 0
      %p162 = por %p160, %p161
      %p163 = scmp.ne.s32.totalorder %s155, %s157
      %p164 = scmp.eq.s32.totalorder %s32, 3
      %p165 = por %p163, %p164
      %p166 = scmp.ne.s32.totalorder %s157, %s158
      %p167 = scmp.eq.s32.totalorder %s32, 0
      %p168 = por %p166, %p167
      %p169 = scmp.ne.s32.totalorder %s157, %s158
      %p170 = scmp.eq.s32.totalorder %s33, 3
      %p171 = por %p169, %p170
      %p173 = scmp.ne.s32.totalorder %s158, %s172
      %p174 = scmp.eq.s32.totalorder %s33, 0
      %p175 = por %p173, %p174
      %s177 = sadd.s32 %s176, 1
      %p180 = scmp.eq.s32.totalorder %s27, 3
      %p181 = scmp.ne.s32.totalorder %s176, %s178
      %p182 = scmp.eq.s32.totalorder %s27, 0
      %p183 = por %p181, %p182
      %p184 = scmp.ne.s32.totalorder %s176, %s178
      %p185 = scmp.eq.s32.totalorder %s32, 3
      %p186 = por %p184, %p185
      %p187 = scmp.ne.s32.totalorder %s178, %s179
      %p188 = scmp.eq.s32.totalorder %s32, 0
      %p189 = por %p187, %p188
      %p190 = scmp.ne.s32.totalorder %s178, %s179
      %p191 = scmp.eq.s32.totalorder %s33, 3
      %p192 = por %p190, %p191
      %p194 = scmp.ne.s32.totalorder %s179, %s193
      %p195 = scmp.eq.s32.totalorder %s33, 0
      %p196 = por %p194, %p195
      %s198 = sadd.s32 %s197, 1
      %p201 = scmp.eq.s32.totalorder %s27, 3
      %p202 = scmp.ne.s32.totalorder %s197, %s199
      %p203 = scmp.eq.s32.totalorder %s27, 0
      %p204 = por %p202, %p203
      %p205 = scmp.ne.s32.totalorder %s197, %s199
      %p206 = scmp.eq.s32.totalorder %s32, 3
      %p207 = por %p205, %p206
      %p208 = scmp.ne.s32.totalorder %s199, %s200
      %p209 = scmp.eq.s32.totalorder %s32, 0
      %p210 = por %p208, %p209
      %p211 = scmp.ne.s32.totalorder %s199, %s200
      %p212 = scmp.eq.s32.totalorder %s33, 3
      %p213 = por %p211, %p212
      %p215 = scmp.ne.s32.totalorder %s200, %s214
      %p216 = scmp.eq.s32.totalorder %s33, 0
      %p217 = por %p215, %p216
      %s219 = sadd.s32 %s218, 1
      %p222 = scmp.eq.s32.totalorder %s27, 3
      %p223 = scmp.ne.s32.totalorder %s218, %s220
      %p224 = scmp.eq.s32.totalorder %s27, 0
      %p225 = por %p223, %p224
      %p226 = scmp.ne.s32.totalorder %s218, %s220
      %p227 = scmp.eq.s32.totalorder %s32, 3
      %p228 = por %p226, %p227
      %p229 = scmp.ne.s32.totalorder %s220, %s221
      %p230 = scmp.eq.s32.totalorder %s32, 0
      %p231 = por %p229, %p230
      %p232 = scmp.ne.s32.totalorder %s220, %s221
      %p233 = scmp.eq.s32.totalorder %s33, 3
      %p234 = por %p232, %p233
      %p236 = scmp.ne.s32.totalorder %s221, %s235
      %p237 = scmp.eq.s32.totalorder %s33, 0
      %p238 = por %p236, %p237
      %s240 = sadd.s32 %s239, 1
      %p243 = scmp.eq.s32.totalorder %s27, 3
      %p244 = scmp.ne.s32.totalorder %s239, %s241
      %p245 = scmp.eq.s32.totalorder %s27, 0
      %p246 = por %p244, %p245
      %p247 = scmp.ne.s32.totalorder %s239, %s241
      %p248 = scmp.eq.s32.totalorder %s32, 3
      %p249 = por %p247, %p248
      %p250 = scmp.ne.s32.totalorder %s241, %s242
      %p251 = scmp.eq.s32.totalorder %s32, 0
      %p252 = por %p250, %p251
      %p253 = scmp.ne.s32.totalorder %s241, %s242
      %p254 = scmp.eq.s32.totalorder %s33, 3
      %p255 = por %p253, %p254
      %p257 = scmp.ne.s32.totalorder %s242, %s256
      %p258 = scmp.eq.s32.totalorder %s33, 0
      %p259 = por %p257, %p258
      %s261 = sadd.s32 %s260, 1
      %p264 = scmp.eq.s32.totalorder %s27, 3
      %p265 = scmp.ne.s32.totalorder %s260, %s262
      %p266 = scmp.eq.s32.totalorder %s27, 0
      %p267 = por %p265, %p266
      %p268 = scmp.ne.s32.totalorder %s260, %s262
      %p269 = scmp.eq.s32.totalorder %s32, 3
      %p270 = por %p268, %p269
      %p271 = scmp.ne.s32.totalorder %s262, %s263
      %p272 = scmp.eq.s32.totalorder %s32, 0
      %p273 = por %p271, %p272
      %p274 = scmp.ne.s32.totalorder %s262, %s263
      %p275 = scmp.eq.s32.totalorder %s33, 3
      %p276 = por %p274, %p275
      %p278 = scmp.ne.s32.totalorder %s263, %s277
      %p279 = scmp.eq.s32.totalorder %s33, 0
      %p280 = por %p278, %p279
      %s282 = sadd.s32 %s281, 1
      %p285 = scmp.eq.s32.totalorder %s27, 3
      %p286 = scmp.ne.s32.totalorder %s281, %s283
      %p287 = scmp.eq.s32.totalorder %s27, 0
      %p288 = por %p286, %p287
      %p289 = scmp.ne.s32.totalorder %s281, %s283
      %p290 = scmp.eq.s32.totalorder %s32, 3
      %p291 = por %p289, %p290
      %p292 = scmp.ne.s32.totalorder %s283, %s284
      %p293 = scmp.eq.s32.totalorder %s32, 0
      %p294 = por %p292, %p293
      %p295 = scmp.ne.s32.totalorder %s283, %s284
      %p296 = scmp.eq.s32.totalorder %s33, 3
      %p297 = por %p295, %p296
      %p299 = scmp.ne.s32.totalorder %s284, %s298
      %p300 = scmp.eq.s32.totalorder %s33, 0
      %p301 = por %p299, %p300
      %s303 = sadd.s32 %s302, 1
      %p306 = scmp.eq.s32.totalorder %s27, 3
      %p307 = scmp.ne.s32.totalorder %s302, %s304
      %p308 = scmp.eq.s32.totalorder %s27, 0
      %p309 = por %p307, %p308
      %p310 = scmp.ne.s32.totalorder %s302, %s304
      %p311 = scmp.eq.s32.totalorder %s32, 3
      %p312 = por %p310, %p311
      %p313 = scmp.ne.s32.totalorder %s304, %s305
      %p314 = scmp.eq.s32.totalorder %s32, 0
      %p315 = por %p313, %p314
      %p316 = scmp.ne.s32.totalorder %s304, %s305
      %p317 = scmp.eq.s32.totalorder %s33, 3
      %p318 = por %p316, %p317
      %p320 = scmp.ne.s32.totalorder %s305, %s319
      %p321 = scmp.eq.s32.totalorder %s33, 0
      %p322 = por %p320, %p321
      %s323 = ssub.s32 %s27, %s34
      %p324 = scmp.eq.s32.totalorder %s323, 0
      %s326 = sadd.s32 %s325, 1
      %s327 = scalar_select %p324, %s325, %s326
      %p330 = pneg %p324
      %p331 = scmp.eq.s32.totalorder %s27, 3
      %p332 = por %p330, %p331
      %p333 = scmp.ne.s32.totalorder %s325, %s328
      %p334 = scmp.eq.s32.totalorder %s27, 0
      %p335 = por %p333, %p334
      %p336 = scmp.ne.s32.totalorder %s325, %s328
      %p337 = scmp.eq.s32.totalorder %s32, 3
      %p338 = por %p336, %p337
      %p339 = scmp.ne.s32.totalorder %s328, %s329
      %p340 = scmp.eq.s32.totalorder %s32, 0
      %p341 = por %p339, %p340
      %p342 = scmp.ne.s32.totalorder %s328, %s329
      %p343 = scmp.eq.s32.totalorder %s33, 3
      %p344 = por %p342, %p343
      %p346 = scmp.ne.s32.totalorder %s329, %s345
      %p347 = scmp.eq.s32.totalorder %s33, 0
      %p348 = por %p346, %p347
      %s349 = ssub.s32 %s27, %s34
      %p350 = scmp.eq.s32.totalorder %s349, 0
      %s352 = sadd.s32 %s351, 1
      %s353 = scalar_select %p350, %s351, %s352
      %p356 = pneg %p350
      %p357 = scmp.eq.s32.totalorder %s27, 3
      %p358 = por %p356, %p357
      %p359 = scmp.ne.s32.totalorder %s351, %s354
      %p360 = scmp.eq.s32.totalorder %s27, 0
      %p361 = por %p359, %p360
      %p362 = scmp.ne.s32.totalorder %s351, %s354
      %p363 = scmp.eq.s32.totalorder %s32, 3
      %p364 = por %p362, %p363
      %p365 = scmp.ne.s32.totalorder %s354, %s355
      %p366 = scmp.eq.s32.totalorder %s32, 0
      %p367 = por %p365, %p366
      %p368 = scmp.ne.s32.totalorder %s354, %s355
      %p369 = scmp.eq.s32.totalorder %s33, 3
      %p370 = por %p368, %p369
      %p372 = scmp.ne.s32.totalorder %s355, %s371
      %p373 = scmp.eq.s32.totalorder %s33, 0
      %p374 = por %p372, %p373
      %p375 = scmp.le.s32.totalorder 1, %s27
      %p376 = scmp.lt.s32.totalorder %s27, 5
      %p377 = pnand %p375, %p376
      %p378 = pneg %p377
      // Predicated region
      $region9: #{tpu_custom_call.1} parent=5 // pred_check
        _
      $region10: #{tpu_custom_call.1} parent=5 // pred_check_branch
        %380 = sbr.rel (%p377) target = $region12
      $region11: #{tpu_custom_call.1} parent=5 // pred_region
        %s381 = ssub.s32 %s27, 1
        // Predicated region
        $region13: #{tpu_custom_call.1} parent=11 // pred_check
          %p382 = pneg %p126
        $region14: #{tpu_custom_call.1} parent=11 // pred_check_branch
          %384 = sbr.rel (%p382) target = $region16
        $region15: #{tpu_custom_call.1} parent=11 // pred_region
          _
        $region16: #{tpu_custom_call.1} parent=11 // pred_fallthru
          _
        // Predicated region
        $region17: #{tpu_custom_call.1} parent=11 // pred_check
          %p385 = pneg %p147
        $region18: #{tpu_custom_call.1} parent=11 // pred_check_branch
          %387 = sbr.rel (%p385) target = $region20
        $region19: #{tpu_custom_call.1} parent=11 // pred_region
          _
        $region20: #{tpu_custom_call.1} parent=11 // pred_fallthru
          _
        // Predicated region
        $region21: #{tpu_custom_call.1} parent=11 // pred_check
          %p388 = pneg %p168
        $region22: #{tpu_custom_call.1} parent=11 // pred_check_branch
          %390 = sbr.rel (%p388) target = $region24
        $region23: #{tpu_custom_call.1} parent=11 // pred_region
          _
        $region24: #{tpu_custom_call.1} parent=11 // pred_fallthru
          _
        // Predicated region
        $region25: #{tpu_custom_call.1} parent=11 // pred_check
          %p391 = pneg %p189
        $region26: #{tpu_custom_call.1} parent=11 // pred_check_branch
          %393 = sbr.rel (%p391) target = $region28
        $region27: #{tpu_custom_call.1} parent=11 // pred_region
          _
        $region28: #{tpu_custom_call.1} parent=11 // pred_fallthru
          _
        // Predicated region
        $region29: #{tpu_custom_call.1} parent=11 // pred_check
          %p394 = pneg %p210
        $region30: #{tpu_custom_call.1} parent=11 // pred_check_branch
          %396 = sbr.rel (%p394) target = $region32
        $region31: #{tpu_custom_call.1} parent=11 // pred_region
          _
        $region32: #{tpu_custom_call.1} parent=11 // pred_fallthru
          _
        // Predicated region
        $region33: #{tpu_custom_call.1} parent=11 // pred_check
          %p397 = pneg %p231
        $region34: #{tpu_custom_call.1} parent=11 // pred_check_branch
          %399 = sbr.rel (%p397) target = $region36
        $region35: #{tpu_custom_call.1} parent=11 // pred_region
          _
        $region36: #{tpu_custom_call.1} parent=11 // pred_fallthru
          _
        // Predicated region
        $region37: #{tpu_custom_call.1} parent=11 // pred_check
          %p400 = pneg %p252
        $region38: #{tpu_custom_call.1} parent=11 // pred_check_branch
          %402 = sbr.rel (%p400) target = $region40
        $region39: #{tpu_custom_call.1} parent=11 // pred_region
          _
        $region40: #{tpu_custom_call.1} parent=11 // pred_fallthru
          _
        // Predicated region
        $region41: #{tpu_custom_call.1} parent=11 // pred_check
          %p403 = pneg %p273
        $region42: #{tpu_custom_call.1} parent=11 // pred_check_branch
          %405 = sbr.rel (%p403) target = $region44
        $region43: #{tpu_custom_call.1} parent=11 // pred_region
          _
        $region44: #{tpu_custom_call.1} parent=11 // pred_fallthru
          _
        // Predicated region
        $region45: #{tpu_custom_call.1} parent=11 // pred_check
          %p406 = pneg %p294
        $region46: #{tpu_custom_call.1} parent=11 // pred_check_branch
          %408 = sbr.rel (%p406) target = $region48
        $region47: #{tpu_custom_call.1} parent=11 // pred_region
          _
        $region48: #{tpu_custom_call.1} parent=11 // pred_fallthru
          _
        // Predicated region
        $region49: #{tpu_custom_call.1} parent=11 // pred_check
          %p409 = pneg %p315
        $region50: #{tpu_custom_call.1} parent=11 // pred_check_branch
          %411 = sbr.rel (%p409) target = $region52
        $region51: #{tpu_custom_call.1} parent=11 // pred_region
          _
        $region52: #{tpu_custom_call.1} parent=11 // pred_fallthru
          _
      $region12: #{tpu_custom_call.1} parent=5 // pred_fallthru
        _
      %p412 = scmp.lt.s32.totalorder %s27, 4
      // Predicated region
      $region53: #{tpu_custom_call.1} parent=5 // pred_check
        %p413 = pneg %p412
      $region54: #{tpu_custom_call.1} parent=5 // pred_check_branch
        %415 = sbr.rel (%p413) target = $region56
      $region55: #{tpu_custom_call.1} parent=5 // pred_region
        // Predicated region
        $region57: #{tpu_custom_call.1} parent=55 // pred_check
          %p416 = pneg %p47
        $region58: #{tpu_custom_call.1} parent=55 // pred_check_branch
          %418 = sbr.rel (%p416) target = $region60
        $region59: #{tpu_custom_call.1} parent=55 // pred_region
          %p419 = scmp.lt.s32.totalorder %s27, 3
          %s420 = scalar_select %p419, %s27, 3
          %s421 = smul.addr %s420, 4
          %s422 = scalar_lea.vmem %s0, %s421
        $region60: #{tpu_custom_call.1} parent=55 // pred_fallthru
          _
        // Predicated region
        $region61: #{tpu_custom_call.1} parent=55 // pred_check
          %p423 = pneg %p73
        $region62: #{tpu_custom_call.1} parent=55 // pred_check_branch
          %425 = sbr.rel (%p423) target = $region64
        $region63: #{tpu_custom_call.1} parent=55 // pred_region
          %p426 = scmp.lt.s32.totalorder %s27, 3
          %s427 = scalar_select %p426, %s27, 3
          %s428 = smul.addr %s427, 4
          %s429 = scalar_lea.vmem %s1, %s428
        $region64: #{tpu_custom_call.1} parent=55 // pred_fallthru
          _
        // Predicated region
        $region65: #{tpu_custom_call.1} parent=55 // pred_check
          %p430 = pneg %p99
        $region66: #{tpu_custom_call.1} parent=55 // pred_check_branch
          %432 = sbr.rel (%p430) target = $region68
        $region67: #{tpu_custom_call.1} parent=55 // pred_region
          %p433 = scmp.lt.s32.totalorder %s27, 3
          %s434 = scalar_select %p433, %s27, 3
          %s435 = smul.addr %s434, 4
          %s436 = scalar_lea.vmem %s2, %s435
        $region68: #{tpu_custom_call.1} parent=55 // pred_fallthru
          _
      $region56: #{tpu_custom_call.1} parent=5 // pred_fallthru
        _
      %p437 = scmp.le.s32.totalorder 1, %s27
      %p438 = scmp.lt.s32.totalorder %s27, 5
      %p439 = pnand %p437, %p438
      %p440 = pneg %p439
      // Predicated region
      $region69: #{tpu_custom_call.1} parent=5 // pred_check
        _
      $region70: #{tpu_custom_call.1} parent=5 // pred_check_branch
        %442 = sbr.rel (%p439) target = $region72
      $region71: #{tpu_custom_call.1} parent=5 // pred_region
        %s443 = ssub.s32 %s27, 1
        %p444 = scmp.lt.s32.totalorder %s32, 3
        %s445 = scalar_select %p444, %s32, 3
        %s446 = smul.addr %s445, 4
        %s447 = scalar_lea.vmem %s0, %s446
        %p448 = pneg %p53
        %p449 = pneg %p50
        %p450 = scmp.lt.s32.totalorder %s32, 3
        %s451 = scalar_select %p450, %s32, 3
        %s452 = smul.addr %s451, 4
        %s453 = scalar_lea.vmem %s1, %s452
        %p454 = pneg %p79
        %p455 = pneg %p76
        %p456 = scmp.lt.s32.totalorder %s32, 3
        %s457 = scalar_select %p456, %s32, 3
        %s458 = smul.addr %s457, 4
        %s459 = scalar_lea.vmem %s2, %s458
        %p460 = pneg %p105
        %p461 = pneg %p102
        %p462 = pneg %p126
        %p463 = pneg %p123
        %p464 = pneg %p147
        %p465 = pneg %p144
        %p466 = pneg %p168
        %p467 = pneg %p165
        %p468 = pneg %p189
        %p469 = pneg %p186
        %p470 = pneg %p210
        %p471 = pneg %p207
        %p472 = pneg %p231
        %p473 = pneg %p228
        %p474 = pneg %p252
        %p475 = pneg %p249
        %p476 = pneg %p273
        %p477 = pneg %p270
        %p478 = pneg %p294
        %p479 = pneg %p291
        %p480 = pneg %p315
        %p481 = pneg %p312
        %p482 = pneg %p341
        %p483 = pneg %p338
        %s484 = sand.u32 %s328, 1
        %s485 = scalar_lea.sflag [#allocation3], %s484
        %s486 = sand.u32 %s328, 1
        %s487 = smul.addr %s486, 4
        %s488 = scalar_lea.vmem [#allocation2], %s487
        %p489 = pneg %p367
        %p490 = pneg %p364
        %s491 = sand.u32 %s354, 1
        %s492 = scalar_lea.sflag [#allocation5], %s491
        %s493 = sand.u32 %s354, 1
        %s494 = smul.addr %s493, 16
        %s495 = scalar_lea.vmem [#allocation4], %s494
        %p496 = scmp.lt.s32.totalorder %s32, 3
        %s497 = scalar_select %p496, %s32, 3
        %s498 = smul.addr %s497, 4
        %s499 = scalar_lea.vmem %s0, %s498
        %p500 = scmp.lt.s32.totalorder %s32, 3
        %s501 = scalar_select %p500, %s32, 3
        %s502 = smul.addr %s501, 4
        %s503 = scalar_lea.vmem %s1, %s502
        %p504 = scmp.lt.s32.totalorder %s32, 3
        %s505 = scalar_select %p504, %s32, 3
        %s506 = smul.addr %s505, 4
        %s507 = scalar_lea.vmem %s2, %s506
        %v509 = vld [vmem:[%s499] sm:$0xf]
        %v510 = vpack.c.bf16 %v509, %v509
        %v511 = vld [vmem:[%s503] sm:$0xf]
        %v512 = vpack.c.bf16 %v511, %v511
        %v513 = vld [vmem:[%s507] sm:$0xf]
        %v514 = vpack.c.bf16 %v513, %v513
        %v515 = vld [vmem:[%s3] sm:$0xf]
        %v516 = vld [vmem:[%s3 + $0x4] sm:$0xf]
        %v517 = vld [vmem:[%s3 + $0x8] sm:$0xf]
        %v518 = vld [vmem:[%s3 + $0xc] sm:$0xf]
        %v519 = vld [vmem:[%s6] sm:$0x1]
        %v521 = vlaneseq
        %v522 = vshrl.u32 %v521, 7
        %v523 = vsub.s32 0, %v522
        %v524 = vrot.slane %v519, %v523
        %v530 = vunpack.c.l.b16 %v515
        %v531 = vunpack.c.l.b16 %v516
        %v532 = vunpack.c.l.b16 %v517
        %v533 = vunpack.c.l.b16 %v518
        %v534 = vpack.c.b16 %v531, %v530
        %v535 = vpack.c.b16 %v533, %v532
        %vm538 = vcmask 261120
        %v540 = vsel %vm538, %v510, 0
        %542 = vmatprep.subr.bf16.mxu0 0
        %543 = vmatpush1.bf16.msra.mxu0 %v534
        %544 = vmatprep.subr.bf16.mxu0 0
        %545 = vmatpush1.bf16.msra.mxu0 %v535
        %546 = vmatprep.subr.bf16.mxu0 0
        %547 = vmatpush1.bf16.msra.mxu0 0
        %548 = vmatprep.subr.bf16.mxu0 0
        %549 = vmatpush1.bf16.msra.mxu0 0
        %550 = vmatprep.subr.bf16.mxu0 0
        %551 = vmatpush1.bf16.msra.mxu0 0
        %552 = vmatprep.subr.bf16.mxu0 0
        %553 = vmatpush1.bf16.msra.mxu0 0
        %554 = vmatprep.subr.bf16.mxu0 0
        %555 = vmatpush1.bf16.msra.mxu0 0
        %556 = vmatprep.subr.bf16.mxu0 0
        %557 = vmatpush1.bf16.msra.mxu0 0
        %558 = vmatprep.subr.bf16.mxu0 0
        %559 = vmatpush1.bf16.msra.mxu0 0
        %560 = vmatprep.subr.bf16.mxu0 0
        %561 = vmatpush1.bf16.msra.mxu0 0
        %562 = vmatprep.subr.bf16.mxu0 0
        %563 = vmatpush1.bf16.msra.mxu0 0
        %564 = vmatprep.subr.bf16.mxu0 0
        %565 = vmatpush1.bf16.msra.mxu0 0
        %566 = vmatprep.subr.bf16.mxu0 0
        %567 = vmatpush1.bf16.msra.mxu0 0
        %568 = vmatprep.subr.bf16.mxu0 0
        %569 = vmatpush1.bf16.msra.mxu0 0
        %570 = vmatprep.subr.bf16.mxu0 0
        %571 = vmatpush1.bf16.msra.mxu0 0
        %572 = vmatprep.subr.bf16.mxu0 0
        %573 = vmatpush1.bf16.msra.mxu0 0
        %574 = vmatprep.mubr.bf16.mxu0 0
        %575 = vmatmul.mubr.bf16.gmra.mrb[0].mxu0 %v540
        %v576 = vpop.f32.mrb[0].mxu0
        %v577 = vadd.f32 %v524, %v576
        %v578 = vpop.f32.mrb[0].mxu0
        %v579 = vpop.f32.mrb[0].mxu0
        %v580 = vpop.f32.mrb[0].mxu0
        %581 = vdwg.mxu0
        %v582 = vpack.c.bf16 %v577, %v577
        %s583 = scalar_lea.vmem %s3, 16
        %v584 = vld [vmem:[%s583] sm:$0xf]
        %v585 = vld [vmem:[%s583 + $0x4] sm:$0xf]
        %v586 = vld [vmem:[%s583 + $0x8] sm:$0xf]
        %v587 = vld [vmem:[%s583 + $0xc] sm:$0xf]
        %s588 = scalar_lea.vmem %s6, 1
        %v589 = vld [vmem:[%s588] sm:$0x1]
        %v591 = vlaneseq
        %v592 = vshrl.u32 %v591, 7
        %v593 = vsub.s32 0, %v592
        %v594 = vrot.slane %v589, %v593
        %v600 = vunpack.c.l.b16 %v584
        %v601 = vunpack.c.l.b16 %v585
        %v602 = vunpack.c.l.b16 %v586
        %v603 = vunpack.c.l.b16 %v587
        %v604 = vpack.c.b16 %v601, %v600
        %v605 = vpack.c.b16 %v603, %v602
        %608 = vmatprep.subr.bf16.mxu0 0
        %609 = vmatpush1.bf16.msra.mxu0 %v604
        %610 = vmatprep.subr.bf16.mxu0 0
        %611 = vmatpush1.bf16.msra.mxu0 %v605
        %612 = vmatprep.subr.bf16.mxu0 0
        %613 = vmatpush1.bf16.msra.mxu0 0
        %614 = vmatprep.subr.bf16.mxu0 0
        %615 = vmatpush1.bf16.msra.mxu0 0
        %616 = vmatprep.subr.bf16.mxu0 0
        %617 = vmatpush1.bf16.msra.mxu0 0
        %618 = vmatprep.subr.bf16.mxu0 0
        %619 = vmatpush1.bf16.msra.mxu0 0
        %620 = vmatprep.subr.bf16.mxu0 0
        %621 = vmatpush1.bf16.msra.mxu0 0
        %622 = vmatprep.subr.bf16.mxu0 0
        %623 = vmatpush1.bf16.msra.mxu0 0
        %624 = vmatprep.subr.bf16.mxu0 0
        %625 = vmatpush1.bf16.msra.mxu0 0
        %626 = vmatprep.subr.bf16.mxu0 0
        %627 = vmatpush1.bf16.msra.mxu0 0
        %628 = vmatprep.subr.bf16.mxu0 0
        %629 = vmatpush1.bf16.msra.mxu0 0
        %630 = vmatprep.subr.bf16.mxu0 0
        %631 = vmatpush1.bf16.msra.mxu0 0
        %632 = vmatprep.subr.bf16.mxu0 0
        %633 = vmatpush1.bf16.msra.mxu0 0
        %634 = vmatprep.subr.bf16.mxu0 0
        %635 = vmatpush1.bf16.msra.mxu0 0
        %636 = vmatprep.subr.bf16.mxu0 0
        %637 = vmatpush1.bf16.msra.mxu0 0
        %638 = vmatprep.subr.bf16.mxu0 0
        %639 = vmatpush1.bf16.msra.mxu0 0
        %640 = vmatprep.mubr.bf16.mxu0 0
        %641 = vmatmul.mubr.bf16.gmra.mrb[0].mxu0 %v540
        %v642 = vpop.f32.mrb[0].mxu0
        %v643 = vadd.f32 %v594, %v642
        %v644 = vpop.f32.mrb[0].mxu0
        %v645 = vpop.f32.mrb[0].mxu0
        %v646 = vpop.f32.mrb[0].mxu0
        %647 = vdwg.mxu0
        %v648 = vpack.c.bf16 %v643, %v643
        %v649 = vld [vmem:[%s4] sm:$0xf]
        %v650 = vld [vmem:[%s4 + $0x4] sm:$0xf]
        %v651 = vld [vmem:[%s4 + $0x8] sm:$0xf]
        %v652 = vld [vmem:[%s4 + $0xc] sm:$0xf]
        %v653 = vld [vmem:[%s7] sm:$0x1]
        %v655 = vlaneseq
        %v656 = vshrl.u32 %v655, 7
        %v657 = vsub.s32 0, %v656
        %v658 = vrot.slane %v653, %v657
        %v664 = vunpack.c.l.b16 %v649
        %v665 = vunpack.c.l.b16 %v650
        %v666 = vunpack.c.l.b16 %v651
        %v667 = vunpack.c.l.b16 %v652
        %v668 = vpack.c.b16 %v665, %v664
        %v669 = vpack.c.b16 %v667, %v666
        %v673 = vsel %vm538, %v512, 0
        %675 = vmatprep.subr.bf16.mxu0 0
        %676 = vmatpush1.bf16.msra.mxu0 %v668
        %677 = vmatprep.subr.bf16.mxu0 0
        %678 = vmatpush1.bf16.msra.mxu0 %v669
        %679 = vmatprep.subr.bf16.mxu0 0
        %680 = vmatpush1.bf16.msra.mxu0 0
        %681 = vmatprep.subr.bf16.mxu0 0
        %682 = vmatpush1.bf16.msra.mxu0 0
        %683 = vmatprep.subr.bf16.mxu0 0
        %684 = vmatpush1.bf16.msra.mxu0 0
        %685 = vmatprep.subr.bf16.mxu0 0
        %686 = vmatpush1.bf16.msra.mxu0 0
        %687 = vmatprep.subr.bf16.mxu0 0
        %688 = vmatpush1.bf16.msra.mxu0 0
        %689 = vmatprep.subr.bf16.mxu0 0
        %690 = vmatpush1.bf16.msra.mxu0 0
        %691 = vmatprep.subr.bf16.mxu0 0
        %692 = vmatpush1.bf16.msra.mxu0 0
        %693 = vmatprep.subr.bf16.mxu0 0
        %694 = vmatpush1.bf16.msra.mxu0 0
        %695 = vmatprep.subr.bf16.mxu0 0
        %696 = vmatpush1.bf16.msra.mxu0 0
        %697 = vmatprep.subr.bf16.mxu0 0
        %698 = vmatpush1.bf16.msra.mxu0 0
        %699 = vmatprep.subr.bf16.mxu0 0
        %700 = vmatpush1.bf16.msra.mxu0 0
        %701 = vmatprep.subr.bf16.mxu0 0
        %702 = vmatpush1.bf16.msra.mxu0 0
        %703 = vmatprep.subr.bf16.mxu0 0
        %704 = vmatpush1.bf16.msra.mxu0 0
        %705 = vmatprep.subr.bf16.mxu0 0
        %706 = vmatpush1.bf16.msra.mxu0 0
        %707 = vmatprep.mubr.bf16.mxu0 0
        %708 = vmatmul.mubr.bf16.gmra.mrb[0].mxu0 %v673
        %v709 = vpop.f32.mrb[0].mxu0
        %v710 = vadd.f32 %v658, %v709
        %v711 = vpop.f32.mrb[0].mxu0
        %v712 = vpop.f32.mrb[0].mxu0
        %v713 = vpop.f32.mrb[0].mxu0
        %714 = vdwg.mxu0
        %v715 = vpack.c.bf16 %v710, %v710
        %s716 = scalar_lea.vmem %s4, 16
        %v717 = vld [vmem:[%s716] sm:$0xf]
        %v718 = vld [vmem:[%s716 + $0x4] sm:$0xf]
        %v719 = vld [vmem:[%s716 + $0x8] sm:$0xf]
        %v720 = vld [vmem:[%s716 + $0xc] sm:$0xf]
        %s721 = scalar_lea.vmem %s7, 1
        %v722 = vld [vmem:[%s721] sm:$0x1]
        %v724 = vlaneseq
        %v725 = vshrl.u32 %v724, 7
        %v726 = vsub.s32 0, %v725
        %v727 = vrot.slane %v722, %v726
        %v733 = vunpack.c.l.b16 %v717
        %v734 = vunpack.c.l.b16 %v718
        %v735 = vunpack.c.l.b16 %v719
        %v736 = vunpack.c.l.b16 %v720
        %v737 = vpack.c.b16 %v734, %v733
        %v738 = vpack.c.b16 %v736, %v735
        %741 = vmatprep.subr.bf16.mxu0 0
        %742 = vmatpush1.bf16.msra.mxu0 %v737
        %743 = vmatprep.subr.bf16.mxu0 0
        %744 = vmatpush1.bf16.msra.mxu0 %v738
        %745 = vmatprep.subr.bf16.mxu0 0
        %746 = vmatpush1.bf16.msra.mxu0 0
        %747 = vmatprep.subr.bf16.mxu0 0
        %748 = vmatpush1.bf16.msra.mxu0 0
        %749 = vmatprep.subr.bf16.mxu0 0
        %750 = vmatpush1.bf16.msra.mxu0 0
        %751 = vmatprep.subr.bf16.mxu0 0
        %752 = vmatpush1.bf16.msra.mxu0 0
        %753 = vmatprep.subr.bf16.mxu0 0
        %754 = vmatpush1.bf16.msra.mxu0 0
        %755 = vmatprep.subr.bf16.mxu0 0
        %756 = vmatpush1.bf16.msra.mxu0 0
        %757 = vmatprep.subr.bf16.mxu0 0
        %758 = vmatpush1.bf16.msra.mxu0 0
        %759 = vmatprep.subr.bf16.mxu0 0
        %760 = vmatpush1.bf16.msra.mxu0 0
        %761 = vmatprep.subr.bf16.mxu0 0
        %762 = vmatpush1.bf16.msra.mxu0 0
        %763 = vmatprep.subr.bf16.mxu0 0
        %764 = vmatpush1.bf16.msra.mxu0 0
        %765 = vmatprep.subr.bf16.mxu0 0
        %766 = vmatpush1.bf16.msra.mxu0 0
        %767 = vmatprep.subr.bf16.mxu0 0
        %768 = vmatpush1.bf16.msra.mxu0 0
        %769 = vmatprep.subr.bf16.mxu0 0
        %770 = vmatpush1.bf16.msra.mxu0 0
        %771 = vmatprep.subr.bf16.mxu0 0
        %772 = vmatpush1.bf16.msra.mxu0 0
        %773 = vmatprep.mubr.bf16.mxu0 0
        %774 = vmatmul.mubr.bf16.gmra.mrb[0].mxu0 %v673
        %v775 = vpop.f32.mrb[0].mxu0
        %v776 = vadd.f32 %v727, %v775
        %v777 = vpop.f32.mrb[0].mxu0
        %v778 = vpop.f32.mrb[0].mxu0
        %v779 = vpop.f32.mrb[0].mxu0
        %780 = vdwg.mxu0
        %v781 = vpack.c.bf16 %v776, %v776
        %v782 = vld [vmem:[%s5] sm:$0xf]
        %v783 = vld [vmem:[%s5 + $0x4] sm:$0xf]
        %v784 = vld [vmem:[%s5 + $0x8] sm:$0xf]
        %v785 = vld [vmem:[%s5 + $0xc] sm:$0xf]
        %v786 = vld [vmem:[%s8] sm:$0x1]
        %v788 = vlaneseq
        %v789 = vshrl.u32 %v788, 7
        %v790 = vsub.s32 0, %v789
        %v791 = vrot.slane %v786, %v790
        %v797 = vunpack.c.l.b16 %v782
        %v798 = vunpack.c.l.b16 %v783
        %v799 = vunpack.c.l.b16 %v784
        %v800 = vunpack.c.l.b16 %v785
        %v801 = vpack.c.b16 %v798, %v797
        %v802 = vpack.c.b16 %v800, %v799
        %v806 = vsel %vm538, %v514, 0
        %808 = vmatprep.subr.bf16.mxu0 0
        %809 = vmatpush1.bf16.msra.mxu0 %v801
        %810 = vmatprep.subr.bf16.mxu0 0
        %811 = vmatpush1.bf16.msra.mxu0 %v802
        %812 = vmatprep.subr.bf16.mxu0 0
        %813 = vmatpush1.bf16.msra.mxu0 0
        %814 = vmatprep.subr.bf16.mxu0 0
        %815 = vmatpush1.bf16.msra.mxu0 0
        %816 = vmatprep.subr.bf16.mxu0 0
        %817 = vmatpush1.bf16.msra.mxu0 0
        %818 = vmatprep.subr.bf16.mxu0 0
        %819 = vmatpush1.bf16.msra.mxu0 0
        %820 = vmatprep.subr.bf16.mxu0 0
        %821 = vmatpush1.bf16.msra.mxu0 0
        %822 = vmatprep.subr.bf16.mxu0 0
        %823 = vmatpush1.bf16.msra.mxu0 0
        %824 = vmatprep.subr.bf16.mxu0 0
        %825 = vmatpush1.bf16.msra.mxu0 0
        %826 = vmatprep.subr.bf16.mxu0 0
        %827 = vmatpush1.bf16.msra.mxu0 0
        %828 = vmatprep.subr.bf16.mxu0 0
        %829 = vmatpush1.bf16.msra.mxu0 0
        %830 = vmatprep.subr.bf16.mxu0 0
        %831 = vmatpush1.bf16.msra.mxu0 0
        %832 = vmatprep.subr.bf16.mxu0 0
        %833 = vmatpush1.bf16.msra.mxu0 0
        %834 = vmatprep.subr.bf16.mxu0 0
        %835 = vmatpush1.bf16.msra.mxu0 0
        %836 = vmatprep.subr.bf16.mxu0 0
        %837 = vmatpush1.bf16.msra.mxu0 0
        %838 = vmatprep.subr.bf16.mxu0 0
        %839 = vmatpush1.bf16.msra.mxu0 0
        %840 = vmatprep.mubr.bf16.mxu0 0
        %841 = vmatmul.mubr.bf16.gmra.mrb[0].mxu0 %v806
        %v842 = vpop.f32.mrb[0].mxu0
        %v843 = vadd.f32 %v791, %v842
        %v844 = vpop.f32.mrb[0].mxu0
        %v845 = vpop.f32.mrb[0].mxu0
        %v846 = vpop.f32.mrb[0].mxu0
        %847 = vdwg.mxu0
        %v848 = vpack.c.bf16 %v843, %v843
        %s849 = scalar_lea.vmem %s5, 16
        %v850 = vld [vmem:[%s849] sm:$0xf]
        %v851 = vld [vmem:[%s849 + $0x4] sm:$0xf]
        %v852 = vld [vmem:[%s849 + $0x8] sm:$0xf]
        %v853 = vld [vmem:[%s849 + $0xc] sm:$0xf]
        %s854 = scalar_lea.vmem %s8, 1
        %v855 = vld [vmem:[%s854] sm:$0x1]
        %v857 = vlaneseq
        %v858 = vshrl.u32 %v857, 7
        %v859 = vsub.s32 0, %v858
        %v860 = vrot.slane %v855, %v859
        %v866 = vunpack.c.l.b16 %v850
        %v867 = vunpack.c.l.b16 %v851
        %v868 = vunpack.c.l.b16 %v852
        %v869 = vunpack.c.l.b16 %v853
        %v870 = vpack.c.b16 %v867, %v866
        %v871 = vpack.c.b16 %v869, %v868
        %874 = vmatprep.subr.bf16.mxu0 0
        %875 = vmatpush1.bf16.msra.mxu0 %v870
        %876 = vmatprep.subr.bf16.mxu0 0
        %877 = vmatpush1.bf16.msra.mxu0 %v871
        %878 = vmatprep.subr.bf16.mxu0 0
        %879 = vmatpush1.bf16.msra.mxu0 0
        %880 = vmatprep.subr.bf16.mxu0 0
        %881 = vmatpush1.bf16.msra.mxu0 0
        %882 = vmatprep.subr.bf16.mxu0 0
        %883 = vmatpush1.bf16.msra.mxu0 0
        %884 = vmatprep.subr.bf16.mxu0 0
        %885 = vmatpush1.bf16.msra.mxu0 0
        %886 = vmatprep.subr.bf16.mxu0 0
        %887 = vmatpush1.bf16.msra.mxu0 0
        %888 = vmatprep.subr.bf16.mxu0 0
        %889 = vmatpush1.bf16.msra.mxu0 0
        %890 = vmatprep.subr.bf16.mxu0 0
        %891 = vmatpush1.bf16.msra.mxu0 0
        %892 = vmatprep.subr.bf16.mxu0 0
        %893 = vmatpush1.bf16.msra.mxu0 0
        %894 = vmatprep.subr.bf16.mxu0 0
        %895 = vmatpush1.bf16.msra.mxu0 0
        %896 = vmatprep.subr.bf16.mxu0 0
        %897 = vmatpush1.bf16.msra.mxu0 0
        %898 = vmatprep.subr.bf16.mxu0 0
        %899 = vmatpush1.bf16.msra.mxu0 0
        %900 = vmatprep.subr.bf16.mxu0 0
        %901 = vmatpush1.bf16.msra.mxu0 0
        %902 = vmatprep.subr.bf16.mxu0 0
        %903 = vmatpush1.bf16.msra.mxu0 0
        %904 = vmatprep.subr.bf16.mxu0 0
        %905 = vmatpush1.bf16.msra.mxu0 0
        %906 = vmatprep.mubr.bf16.mxu0 0
        %907 = vmatmul.mubr.bf16.gmra.mrb[0].mxu0 %v806
        %v908 = vpop.f32.mrb[0].mxu0
        %v909 = vadd.f32 %v860, %v908
        %v910 = vpop.f32.mrb[0].mxu0
        %v911 = vpop.f32.mrb[0].mxu0
        %v912 = vpop.f32.mrb[0].mxu0
        %913 = vdwg.mxu0
        %v914 = vpack.c.bf16 %v909, %v909
        %vm915 = vcmask 130048
        %v917 = vsel %vm915, %v582, 0
        %v920 = vsel %vm915, %v715, 0
        %922 = vmatprep.subr.bf16.mxu0 0
        %923 = vmatpush1.bf16.xpose.msra.mxu0 %v920
        %924 = vmatprep.subr.bf16.mxu0 0
        %925 = vmatpush1.bf16.xpose.msra.mxu0 0
        %926 = vmatprep.subr.bf16.mxu0 0
        %927 = vmatpush1.bf16.xpose.msra.mxu0 0
        %928 = vmatprep.subr.bf16.mxu0 0
        %929 = vmatpush1.bf16.xpose.msra.mxu0 0
        %930 = vmatprep.subr.bf16.mxu0 0
        %931 = vmatpush1.bf16.xpose.msra.mxu0 0
        %932 = vmatprep.subr.bf16.mxu0 0
        %933 = vmatpush1.bf16.xpose.msra.mxu0 0
        %934 = vmatprep.subr.bf16.mxu0 0
        %935 = vmatpush1.bf16.xpose.msra.mxu0 0
        %936 = vmatprep.subr.bf16.mxu0 0
        %937 = vmatpush1.bf16.xpose.msra.mxu0 0
        %938 = vmatprep.subr.bf16.mxu0 0
        %939 = vmatpush1.bf16.xpose.msra.mxu0 0
        %940 = vmatprep.subr.bf16.mxu0 0
        %941 = vmatpush1.bf16.xpose.msra.mxu0 0
        %942 = vmatprep.subr.bf16.mxu0 0
        %943 = vmatpush1.bf16.xpose.msra.mxu0 0
        %944 = vmatprep.subr.bf16.mxu0 0
        %945 = vmatpush1.bf16.xpose.msra.mxu0 0
        %946 = vmatprep.subr.bf16.mxu0 0
        %947 = vmatpush1.bf16.xpose.msra.mxu0 0
        %948 = vmatprep.subr.bf16.mxu0 0
        %949 = vmatpush1.bf16.xpose.msra.mxu0 0
        %950 = vmatprep.subr.bf16.mxu0 0
        %951 = vmatpush1.bf16.xpose.msra.mxu0 0
        %952 = vmatprep.subr.bf16.mxu0 0
        %953 = vmatpush1.bf16.xpose.msra.mxu0 0
        %954 = vmatprep.mubr.bf16.mxu0 0
        %955 = vmatmul.mubr.bf16.gmra.mrb[0].mxu0 %v917
        %v956 = vpop.f32.mrb[0].mxu0
        %v957 = vadd.f32 0.0, %v956
        %v958 = vpop.f32.mrb[0].mxu0
        %v959 = vpop.f32.mrb[0].mxu0
        %v960 = vpop.f32.mrb[0].mxu0
        %961 = vdwg.mxu0
        %v963 = vsel %vm915, %v781, 0
        %965 = vmatprep.subr.bf16.mxu0 0
        %966 = vmatpush1.bf16.xpose.msra.mxu0 %v963
        %967 = vmatprep.subr.bf16.mxu0 0
        %968 = vmatpush1.bf16.xpose.msra.mxu0 0
        %969 = vmatprep.subr.bf16.mxu0 0
        %970 = vmatpush1.bf16.xpose.msra.mxu0 0
        %971 = vmatprep.subr.bf16.mxu0 0
        %972 = vmatpush1.bf16.xpose.msra.mxu0 0
        %973 = vmatprep.subr.bf16.mxu0 0
        %974 = vmatpush1.bf16.xpose.msra.mxu0 0
        %975 = vmatprep.subr.bf16.mxu0 0
        %976 = vmatpush1.bf16.xpose.msra.mxu0 0
        %977 = vmatprep.subr.bf16.mxu0 0
        %978 = vmatpush1.bf16.xpose.msra.mxu0 0
        %979 = vmatprep.subr.bf16.mxu0 0
        %980 = vmatpush1.bf16.xpose.msra.mxu0 0
        %981 = vmatprep.subr.bf16.mxu0 0
        %982 = vmatpush1.bf16.xpose.msra.mxu0 0
        %983 = vmatprep.subr.bf16.mxu0 0
        %984 = vmatpush1.bf16.xpose.msra.mxu0 0
        %985 = vmatprep.subr.bf16.mxu0 0
        %986 = vmatpush1.bf16.xpose.msra.mxu0 0
        %987 = vmatprep.subr.bf16.mxu0 0
        %988 = vmatpush1.bf16.xpose.msra.mxu0 0
        %989 = vmatprep.subr.bf16.mxu0 0
        %990 = vmatpush1.bf16.xpose.msra.mxu0 0
        %991 = vmatprep.subr.bf16.mxu0 0
        %992 = vmatpush1.bf16.xpose.msra.mxu0 0
        %993 = vmatprep.subr.bf16.mxu0 0
        %994 = vmatpush1.bf16.xpose.msra.mxu0 0
        %995 = vmatprep.subr.bf16.mxu0 0
        %996 = vmatpush1.bf16.xpose.msra.mxu0 0
        %997 = vmatprep.mubr.bf16.mxu0 0
        %998 = vmatmul.mubr.bf16.gmra.mrb[0].mxu0 %v917
        %v999 = vpop.f32.mrb[0].mxu0
        %v1000 = vadd.f32 0.0, %v999
        %v1001 = vpop.f32.mrb[0].mxu0
        %v1002 = vpop.f32.mrb[0].mxu0
        %v1003 = vpop.f32.mrb[0].mxu0
        %1004 = vdwg.mxu0
        %vm1005 = vcmask 27648
        %v1006 = vsel %vm1005, %v957, -inf
        %1007 = vmax.xlane.f32.xlu0 %v1006
        %v1008 = vpop.xlane.xlu0 %1007
        %v1009 = vsel %vm1005, %v1000, -inf
        %1010 = vmax.xlane.f32.xlu0 %v1009
        %v1011 = vpop.xlane.xlu0 %1010
        %v1012 = vmax.f32 %v1008, %v1011
        %v1013 = vsub.f32 %v957, %v1012
        %v1014 = vmul.f32 %v1013, 1.442695
        %v1015 = vpow.pop %v1014
        %v1016 = vsub.f32 %v1000, %v1012
        %v1017 = vmul.f32 %v1016, 1.442695
        %v1018 = vpow.pop %v1017
        %v1019 = vsel %vm1005, %v1015, 0.0
        %1020 = vadd.xlane.f32.xlu0 %v1019
        %v1021 = vpop.xlane.xlu0 %1020
        %v1022 = vsel %vm1005, %v1018, 0.0
        %1023 = vadd.xlane.f32.xlu0 %v1022
        %v1024 = vpop.xlane.xlu0 %1023
        %v1025 = vadd.f32 %v1021, %v1024
        %v1026 = vrcp.pop %v1025
        %v1027 = vmul.f32 1.0, %v1026
        %v1028 = vmul.f32 %v1015, %v1027
        %1029 = vst.msk [vmem:[%s495] sm:$0xf] %vm1005, %v1028
        %v1030 = vpack.c.bf16 %v1028, %v1028
        %v1031 = vmul.f32 %v1018, %v1027
        %s1032 = scalar_lea.vmem %s495, 4 [#allocation4]
        %1033 = vst.msk [vmem:[%s1032] sm:$0xf] %vm1005, %v1031
        %v1034 = vpack.c.bf16 %v1031, %v1031
        %vm1035 = vcmask 31744
        %v1037 = vsel %vm1035, %v1034, 0
        %vm1039 = vcmask 1041408
        %v1041 = vsel %vm1039, %v914, 0
        %1043 = vmatprep.subr.bf16.mxu0 0
        %1044 = vmatpush1.bf16.msra.mxu0 %v1041
        %1045 = vmatprep.subr.bf16.mxu0 0
        %1046 = vmatpush1.bf16.msra.mxu0 0
        %1047 = vmatprep.subr.bf16.mxu0 0
        %1048 = vmatpush1.bf16.msra.mxu0 0
        %1049 = vmatprep.subr.bf16.mxu0 0
        %1050 = vmatpush1.bf16.msra.mxu0 0
        %1051 = vmatprep.subr.bf16.mxu0 0
        %1052 = vmatpush1.bf16.msra.mxu0 0
        %1053 = vmatprep.subr.bf16.mxu0 0
        %1054 = vmatpush1.bf16.msra.mxu0 0
        %1055 = vmatprep.subr.bf16.mxu0 0
        %1056 = vmatpush1.bf16.msra.mxu0 0
        %1057 = vmatprep.subr.bf16.mxu0 0
        %1058 = vmatpush1.bf16.msra.mxu0 0
        %1059 = vmatprep.subr.bf16.mxu0 0
        %1060 = vmatpush1.bf16.msra.mxu0 0
        %1061 = vmatprep.subr.bf16.mxu0 0
        %1062 = vmatpush1.bf16.msra.mxu0 0
        %1063 = vmatprep.subr.bf16.mxu0 0
        %1064 = vmatpush1.bf16.msra.mxu0 0
        %1065 = vmatprep.subr.bf16.mxu0 0
        %1066 = vmatpush1.bf16.msra.mxu0 0
        %1067 = vmatprep.subr.bf16.mxu0 0
        %1068 = vmatpush1.bf16.msra.mxu0 0
        %1069 = vmatprep.subr.bf16.mxu0 0
        %1070 = vmatpush1.bf16.msra.mxu0 0
        %1071 = vmatprep.subr.bf16.mxu0 0
        %1072 = vmatpush1.bf16.msra.mxu0 0
        %1073 = vmatprep.subr.bf16.mxu0 0
        %1074 = vmatpush1.bf16.msra.mxu0 0
        %1075 = vmatprep.mubr.bf16.mxu0 0
        %1076 = vmatmul.mubr.bf16.gmra.mrb[0].mxu0 %v1037
        %v1077 = vpop.f32.mrb[0].mxu0
        %v1078 = vadd.f32 0.0, %v1077
        %v1079 = vpop.f32.mrb[0].mxu0
        %v1080 = vpop.f32.mrb[0].mxu0
        %v1081 = vpop.f32.mrb[0].mxu0
        %1082 = vdwg.mxu0
        %v1084 = vsel %vm1035, %v1030, 0
        %v1087 = vsel %vm1039, %v848, 0
        %1089 = vmatprep.subr.bf16.mxu0 0
        %1090 = vmatpush1.bf16.msra.mxu0 %v1087
        %1091 = vmatprep.subr.bf16.mxu0 0
        %1092 = vmatpush1.bf16.msra.mxu0 0
        %1093 = vmatprep.subr.bf16.mxu0 0
        %1094 = vmatpush1.bf16.msra.mxu0 0
        %1095 = vmatprep.subr.bf16.mxu0 0
        %1096 = vmatpush1.bf16.msra.mxu0 0
        %1097 = vmatprep.subr.bf16.mxu0 0
        %1098 = vmatpush1.bf16.msra.mxu0 0
        %1099 = vmatprep.subr.bf16.mxu0 0
        %1100 = vmatpush1.bf16.msra.mxu0 0
        %1101 = vmatprep.subr.bf16.mxu0 0
        %1102 = vmatpush1.bf16.msra.mxu0 0
        %1103 = vmatprep.subr.bf16.mxu0 0
        %1104 = vmatpush1.bf16.msra.mxu0 0
        %1105 = vmatprep.subr.bf16.mxu0 0
        %1106 = vmatpush1.bf16.msra.mxu0 0
        %1107 = vmatprep.subr.bf16.mxu0 0
        %1108 = vmatpush1.bf16.msra.mxu0 0
        %1109 = vmatprep.subr.bf16.mxu0 0
        %1110 = vmatpush1.bf16.msra.mxu0 0
        %1111 = vmatprep.subr.bf16.mxu0 0
        %1112 = vmatpush1.bf16.msra.mxu0 0
        %1113 = vmatprep.subr.bf16.mxu0 0
        %1114 = vmatpush1.bf16.msra.mxu0 0
        %1115 = vmatprep.subr.bf16.mxu0 0
        %1116 = vmatpush1.bf16.msra.mxu0 0
        %1117 = vmatprep.subr.bf16.mxu0 0
        %1118 = vmatpush1.bf16.msra.mxu0 0
        %1119 = vmatprep.subr.bf16.mxu0 0
        %1120 = vmatpush1.bf16.msra.mxu0 0
        %1121 = vmatprep.mubr.bf16.mxu0 0
        %1122 = vmatmul.mubr.bf16.gmra.mrb[0].mxu0 %v1084
        %v1123 = vpop.f32.mrb[0].mxu0
        %v1124 = vadd.f32 %v1078, %v1123
        %v1125 = vpop.f32.mrb[0].mxu0
        %v1126 = vpop.f32.mrb[0].mxu0
        %v1127 = vpop.f32.mrb[0].mxu0
        %1128 = vdwg.mxu0
        %v1129 = vpack.c.bf16 %v1124, %v1124
        %v1130 = vld [vmem:[%s9] sm:$0xf]
        %v1131 = vld [vmem:[%s9 + $0x4] sm:$0xf]
        %v1133 = vsel %vm915, %v648, 0
        %1135 = vmatprep.subr.bf16.mxu0 0
        %1136 = vmatpush1.bf16.xpose.msra.mxu0 %v920
        %1137 = vmatprep.subr.bf16.mxu0 0
        %1138 = vmatpush1.bf16.xpose.msra.mxu0 0
        %1139 = vmatprep.subr.bf16.mxu0 0
        %1140 = vmatpush1.bf16.xpose.msra.mxu0 0
        %1141 = vmatprep.subr.bf16.mxu0 0
        %1142 = vmatpush1.bf16.xpose.msra.mxu0 0
        %1143 = vmatprep.subr.bf16.mxu0 0
        %1144 = vmatpush1.bf16.xpose.msra.mxu0 0
        %1145 = vmatprep.subr.bf16.mxu0 0
        %1146 = vmatpush1.bf16.xpose.msra.mxu0 0
        %1147 = vmatprep.subr.bf16.mxu0 0
        %1148 = vmatpush1.bf16.xpose.msra.mxu0 0
        %1149 = vmatprep.subr.bf16.mxu0 0
        %1150 = vmatpush1.bf16.xpose.msra.mxu0 0
        %1151 = vmatprep.subr.bf16.mxu0 0
        %1152 = vmatpush1.bf16.xpose.msra.mxu0 0
        %1153 = vmatprep.subr.bf16.mxu0 0
        %1154 = vmatpush1.bf16.xpose.msra.mxu0 0
        %1155 = vmatprep.subr.bf16.mxu0 0
        %1156 = vmatpush1.bf16.xpose.msra.mxu0 0
        %1157 = vmatprep.subr.bf16.mxu0 0
        %1158 = vmatpush1.bf16.xpose.msra.mxu0 0
        %1159 = vmatprep.subr.bf16.mxu0 0
        %1160 = vmatpush1.bf16.xpose.msra.mxu0 0
        %1161 = vmatprep.subr.bf16.mxu0 0
        %1162 = vmatpush1.bf16.xpose.msra.mxu0 0
        %1163 = vmatprep.subr.bf16.mxu0 0
        %1164 = vmatpush1.bf16.xpose.msra.mxu0 0
        %1165 = vmatprep.subr.bf16.mxu0 0
        %1166 = vmatpush1.bf16.xpose.msra.mxu0 0
        %1167 = vmatprep.mubr.bf16.mxu0 0
        %1168 = vmatmul.mubr.bf16.gmra.mrb[0].mxu0 %v1133
        %v1169 = vpop.f32.mrb[0].mxu0
        %v1170 = vadd.f32 0.0, %v1169
        %v1171 = vpop.f32.mrb[0].mxu0
        %v1172 = vpop.f32.mrb[0].mxu0
        %v1173 = vpop.f32.mrb[0].mxu0
        %1174 = vdwg.mxu0
        %1175 = vmatprep.subr.bf16.mxu0 0
        %1176 = vmatpush1.bf16.xpose.msra.mxu0 %v963
        %1177 = vmatprep.subr.bf16.mxu0 0
        %1178 = vmatpush1.bf16.xpose.msra.mxu0 0
        %1179 = vmatprep.subr.bf16.mxu0 0
        %1180 = vmatpush1.bf16.xpose.msra.mxu0 0
        %1181 = vmatprep.subr.bf16.mxu0 0
        %1182 = vmatpush1.bf16.xpose.msra.mxu0 0
        %1183 = vmatprep.subr.bf16.mxu0 0
        %1184 = vmatpush1.bf16.xpose.msra.mxu0 0
        %1185 = vmatprep.subr.bf16.mxu0 0
        %1186 = vmatpush1.bf16.xpose.msra.mxu0 0
        %1187 = vmatprep.subr.bf16.mxu0 0
        %1188 = vmatpush1.bf16.xpose.msra.mxu0 0
        %1189 = vmatprep.subr.bf16.mxu0 0
        %1190 = vmatpush1.bf16.xpose.msra.mxu0 0
        %1191 = vmatprep.subr.bf16.mxu0 0
        %1192 = vmatpush1.bf16.xpose.msra.mxu0 0
        %1193 = vmatprep.subr.bf16.mxu0 0
        %1194 = vmatpush1.bf16.xpose.msra.mxu0 0
        %1195 = vmatprep.subr.bf16.mxu0 0
        %1196 = vmatpush1.bf16.xpose.msra.mxu0 0
        %1197 = vmatprep.subr.bf16.mxu0 0
        %1198 = vmatpush1.bf16.xpose.msra.mxu0 0
        %1199 = vmatprep.subr.bf16.mxu0 0
        %1200 = vmatpush1.bf16.xpose.msra.mxu0 0
        %1201 = vmatprep.subr.bf16.mxu0 0
        %1202 = vmatpush1.bf16.xpose.msra.mxu0 0
        %1203 = vmatprep.subr.bf16.mxu0 0
        %1204 = vmatpush1.bf16.xpose.msra.mxu0 0
        %1205 = vmatprep.subr.bf16.mxu0 0
        %1206 = vmatpush1.bf16.xpose.msra.mxu0 0
        %1207 = vmatprep.mubr.bf16.mxu0 0
        %1208 = vmatmul.mubr.bf16.gmra.mrb[0].mxu0 %v1133
        %v1209 = vpop.f32.mrb[0].mxu0
        %v1210 = vadd.f32 0.0, %v1209
        %v1211 = vpop.f32.mrb[0].mxu0
        %v1212 = vpop.f32.mrb[0].mxu0
        %v1213 = vpop.f32.mrb[0].mxu0
        %1214 = vdwg.mxu0
        %v1215 = vsel %vm1005, %v1170, -inf
        %1216 = vmax.xlane.f32.xlu0 %v1215
        %v1217 = vpop.xlane.xlu0 %1216
        %v1218 = vsel %vm1005, %v1210, -inf
        %1219 = vmax.xlane.f32.xlu0 %v1218
        %v1220 = vpop.xlane.xlu0 %1219
        %v1221 = vmax.f32 %v1217, %v1220
        %v1222 = vsub.f32 %v1170, %v1221
        %v1223 = vmul.f32 %v1222, 1.442695
        %v1224 = vpow.pop %v1223
        %v1225 = vsub.f32 %v1210, %v1221
        %v1226 = vmul.f32 %v1225, 1.442695
        %v1227 = vpow.pop %v1226
        %v1228 = vsel %vm1005, %v1224, 0.0
        %1229 = vadd.xlane.f32.xlu0 %v1228
        %v1230 = vpop.xlane.xlu0 %1229
        %v1231 = vsel %vm1005, %v1227, 0.0
        %1232 = vadd.xlane.f32.xlu0 %v1231
        %v1233 = vpop.xlane.xlu0 %1232
        %v1234 = vadd.f32 %v1230, %v1233
        %v1235 = vrcp.pop %v1234
        %v1236 = vmul.f32 1.0, %v1235
        %v1237 = vmul.f32 %v1224, %v1236
        %s1238 = scalar_lea.vmem %s495, 8 [#allocation4]
        %1239 = vst.msk [vmem:[%s1238] sm:$0xf] %vm1005, %v1237
        %v1240 = vpack.c.bf16 %v1237, %v1237
        %v1241 = vmul.f32 %v1227, %v1236
        %s1242 = scalar_lea.vmem %s495, 12 [#allocation4]
        %1243 = vst.msk [vmem:[%s1242] sm:$0xf] %vm1005, %v1241
        %v1244 = vpack.c.bf16 %v1241, %v1241
        %v1246 = vsel %vm1035, %v1244, 0
        %1248 = vmatprep.subr.bf16.mxu0 0
        %1249 = vmatpush1.bf16.msra.mxu0 %v1041
        %1250 = vmatprep.subr.bf16.mxu0 0
        %1251 = vmatpush1.bf16.msra.mxu0 0
        %1252 = vmatprep.subr.bf16.mxu0 0
        %1253 = vmatpush1.bf16.msra.mxu0 0
        %1254 = vmatprep.subr.bf16.mxu0 0
        %1255 = vmatpush1.bf16.msra.mxu0 0
        %1256 = vmatprep.subr.bf16.mxu0 0
        %1257 = vmatpush1.bf16.msra.mxu0 0
        %1258 = vmatprep.subr.bf16.mxu0 0
        %1259 = vmatpush1.bf16.msra.mxu0 0
        %1260 = vmatprep.subr.bf16.mxu0 0
        %1261 = vmatpush1.bf16.msra.mxu0 0
        %1262 = vmatprep.subr.bf16.mxu0 0
        %1263 = vmatpush1.bf16.msra.mxu0 0
        %1264 = vmatprep.subr.bf16.mxu0 0
        %1265 = vmatpush1.bf16.msra.mxu0 0
        %1266 = vmatprep.subr.bf16.mxu0 0
        %1267 = vmatpush1.bf16.msra.mxu0 0
        %1268 = vmatprep.subr.bf16.mxu0 0
        %1269 = vmatpush1.bf16.msra.mxu0 0
        %1270 = vmatprep.subr.bf16.mxu0 0
        %1271 = vmatpush1.bf16.msra.mxu0 0
        %1272 = vmatprep.subr.bf16.mxu0 0
        %1273 = vmatpush1.bf16.msra.mxu0 0
        %1274 = vmatprep.subr.bf16.mxu0 0
        %1275 = vmatpush1.bf16.msra.mxu0 0
        %1276 = vmatprep.subr.bf16.mxu0 0
        %1277 = vmatpush1.bf16.msra.mxu0 0
        %1278 = vmatprep.subr.bf16.mxu0 0
        %1279 = vmatpush1.bf16.msra.mxu0 0
        %1280 = vmatprep.mubr.bf16.mxu0 0
        %1281 = vmatmul.mubr.bf16.gmra.mrb[0].mxu0 %v1246
        %v1282 = vpop.f32.mrb[0].mxu0
        %v1283 = vadd.f32 0.0, %v1282
        %v1284 = vpop.f32.mrb[0].mxu0
        %v1285 = vpop.f32.mrb[0].mxu0
        %v1286 = vpop.f32.mrb[0].mxu0
        %1287 = vdwg.mxu0
        %v1289 = vsel %vm1035, %v1240, 0
        %1291 = vmatprep.subr.bf16.mxu0 0
        %1292 = vmatpush1.bf16.msra.mxu0 %v1087
        %1293 = vmatprep.subr.bf16.mxu0 0
        %1294 = vmatpush1.bf16.msra.mxu0 0
        %1295 = vmatprep.subr.bf16.mxu0 0
        %1296 = vmatpush1.bf16.msra.mxu0 0
        %1297 = vmatprep.subr.bf16.mxu0 0
        %1298 = vmatpush1.bf16.msra.mxu0 0
        %1299 = vmatprep.subr.bf16.mxu0 0
        %1300 = vmatpush1.bf16.msra.mxu0 0
        %1301 = vmatprep.subr.bf16.mxu0 0
        %1302 = vmatpush1.bf16.msra.mxu0 0
        %1303 = vmatprep.subr.bf16.mxu0 0
        %1304 = vmatpush1.bf16.msra.mxu0 0
        %1305 = vmatprep.subr.bf16.mxu0 0
        %1306 = vmatpush1.bf16.msra.mxu0 0
        %1307 = vmatprep.subr.bf16.mxu0 0
        %1308 = vmatpush1.bf16.msra.mxu0 0
        %1309 = vmatprep.subr.bf16.mxu0 0
        %1310 = vmatpush1.bf16.msra.mxu0 0
        %1311 = vmatprep.subr.bf16.mxu0 0
        %1312 = vmatpush1.bf16.msra.mxu0 0
        %1313 = vmatprep.subr.bf16.mxu0 0
        %1314 = vmatpush1.bf16.msra.mxu0 0
        %1315 = vmatprep.subr.bf16.mxu0 0
        %1316 = vmatpush1.bf16.msra.mxu0 0
        %1317 = vmatprep.subr.bf16.mxu0 0
        %1318 = vmatpush1.bf16.msra.mxu0 0
        %1319 = vmatprep.subr.bf16.mxu0 0
        %1320 = vmatpush1.bf16.msra.mxu0 0
        %1321 = vmatprep.subr.bf16.mxu0 0
        %1322 = vmatpush1.bf16.msra.mxu0 0
        %1323 = vmatprep.mubr.bf16.mxu0 0
        %1324 = vmatmul.mubr.bf16.gmra.mrb[0].mxu0 %v1289
        %v1325 = vpop.f32.mrb[0].mxu0
        %v1326 = vadd.f32 %v1283, %v1325
        %v1327 = vpop.f32.mrb[0].mxu0
        %v1328 = vpop.f32.mrb[0].mxu0
        %v1329 = vpop.f32.mrb[0].mxu0
        %1330 = vdwg.mxu0
        %v1331 = vpack.c.bf16 %v1326, %v1326
        %s1332 = scalar_lea.vmem %s9, 8
        %v1333 = vld [vmem:[%s1332] sm:$0xf]
        %v1334 = vld [vmem:[%s1332 + $0x4] sm:$0xf]
        %v1337 = vunpack.c.l.b16 %v1333
        %v1338 = vunpack.c.l.b16 %v1334
        %v1339 = vpack.c.b16 %v1338, %v1337
        %v1342 = vsel %vm915, %v1331, 0
        %1344 = vmatprep.subr.bf16.mxu0 0
        %1345 = vmatpush1.bf16.msra.mxu0 %v1339
        %1346 = vmatprep.subr.bf16.mxu0 0
        %1347 = vmatpush1.bf16.msra.mxu0 0
        %1348 = vmatprep.subr.bf16.mxu0 0
        %1349 = vmatpush1.bf16.msra.mxu0 0
        %1350 = vmatprep.subr.bf16.mxu0 0
        %1351 = vmatpush1.bf16.msra.mxu0 0
        %1352 = vmatprep.subr.bf16.mxu0 0
        %1353 = vmatpush1.bf16.msra.mxu0 0
        %1354 = vmatprep.subr.bf16.mxu0 0
        %1355 = vmatpush1.bf16.msra.mxu0 0
        %1356 = vmatprep.subr.bf16.mxu0 0
        %1357 = vmatpush1.bf16.msra.mxu0 0
        %1358 = vmatprep.subr.bf16.mxu0 0
        %1359 = vmatpush1.bf16.msra.mxu0 0
        %1360 = vmatprep.subr.bf16.mxu0 0
        %1361 = vmatpush1.bf16.msra.mxu0 0
        %1362 = vmatprep.subr.bf16.mxu0 0
        %1363 = vmatpush1.bf16.msra.mxu0 0
        %1364 = vmatprep.subr.bf16.mxu0 0
        %1365 = vmatpush1.bf16.msra.mxu0 0
        %1366 = vmatprep.subr.bf16.mxu0 0
        %1367 = vmatpush1.bf16.msra.mxu0 0
        %1368 = vmatprep.subr.bf16.mxu0 0
        %1369 = vmatpush1.bf16.msra.mxu0 0
        %1370 = vmatprep.subr.bf16.mxu0 0
        %1371 = vmatpush1.bf16.msra.mxu0 0
        %1372 = vmatprep.subr.bf16.mxu0 0
        %1373 = vmatpush1.bf16.msra.mxu0 0
        %1374 = vmatprep.subr.bf16.mxu0 0
        %1375 = vmatpush1.bf16.msra.mxu0 0
        %1376 = vmatprep.mubr.bf16.mxu0 0
        %1377 = vmatmul.mubr.bf16.gmra.mrb[0].mxu0 %v1342
        %v1378 = vpop.f32.mrb[0].mxu0
        %v1379 = vadd.f32 0.0, %v1378
        %v1380 = vpop.f32.mrb[0].mxu0
        %v1381 = vpop.f32.mrb[0].mxu0
        %v1382 = vpop.f32.mrb[0].mxu0
        %1383 = vdwg.mxu0
        %v1386 = vunpack.c.l.b16 %v1130
        %v1387 = vunpack.c.l.b16 %v1131
        %v1388 = vpack.c.b16 %v1387, %v1386
        %v1391 = vsel %vm915, %v1129, 0
        %1393 = vmatprep.subr.bf16.mxu0 0
        %1394 = vmatpush1.bf16.msra.mxu0 %v1388
        %1395 = vmatprep.subr.bf16.mxu0 0
        %1396 = vmatpush1.bf16.msra.mxu0 0
        %1397 = vmatprep.subr.bf16.mxu0 0
        %1398 = vmatpush1.bf16.msra.mxu0 0
        %1399 = vmatprep.subr.bf16.mxu0 0
        %1400 = vmatpush1.bf16.msra.mxu0 0
        %1401 = vmatprep.subr.bf16.mxu0 0
        %1402 = vmatpush1.bf16.msra.mxu0 0
        %1403 = vmatprep.subr.bf16.mxu0 0
        %1404 = vmatpush1.bf16.msra.mxu0 0
        %1405 = vmatprep.subr.bf16.mxu0 0
        %1406 = vmatpush1.bf16.msra.mxu0 0
        %1407 = vmatprep.subr.bf16.mxu0 0
        %1408 = vmatpush1.bf16.msra.mxu0 0
        %1409 = vmatprep.subr.bf16.mxu0 0
        %1410 = vmatpush1.bf16.msra.mxu0 0
        %1411 = vmatprep.subr.bf16.mxu0 0
        %1412 = vmatpush1.bf16.msra.mxu0 0
        %1413 = vmatprep.subr.bf16.mxu0 0
        %1414 = vmatpush1.bf16.msra.mxu0 0
        %1415 = vmatprep.subr.bf16.mxu0 0
        %1416 = vmatpush1.bf16.msra.mxu0 0
        %1417 = vmatprep.subr.bf16.mxu0 0
        %1418 = vmatpush1.bf16.msra.mxu0 0
        %1419 = vmatprep.subr.bf16.mxu0 0
        %1420 = vmatpush1.bf16.msra.mxu0 0
        %1421 = vmatprep.subr.bf16.mxu0 0
        %1422 = vmatpush1.bf16.msra.mxu0 0
        %1423 = vmatprep.subr.bf16.mxu0 0
        %1424 = vmatpush1.bf16.msra.mxu0 0
        %1425 = vmatprep.mubr.bf16.mxu0 0
        %1426 = vmatmul.mubr.bf16.gmra.mrb[0].mxu0 %v1391
        %v1427 = vpop.f32.mrb[0].mxu0
        %v1428 = vadd.f32 %v1379, %v1427
        %v1429 = vpop.f32.mrb[0].mxu0
        %v1430 = vpop.f32.mrb[0].mxu0
        %v1431 = vpop.f32.mrb[0].mxu0
        %1432 = vdwg.mxu0
        %v1433 = vld [vmem:[%s10] sm:$0x1]
        %v1435 = vlaneseq
        %v1436 = vshrl.u32 %v1435, 7
        %v1437 = vsub.s32 0, %v1436
        %v1438 = vrot.slane %v1433, %v1437
        %v1440 = vadd.f32 %v1428, %v1438
        %v1441 = vmax.f32 %v1440, 0.0
        %v1442 = vadd.f32 %v509, %v1441
        %vm1443 = vcmask 257024
        %v1444 = vsel %vm1443, %v1442, 0.0
        %1445 = vadd.xlane.f32.xlu0 %v1444
        %v1446 = vpop.xlane.xlu0 %1445
        %v1447 = vrcp.pop 32.0
        %v1448 = vmul.f32 %v1446, %v1447
        %v1449 = vsub.f32 %v1442, %v1448
        %v1450 = vmul.f32 %v1449, %v1449
        %v1451 = vsel %vm1443, %v1450, 0.0
        %1452 = vadd.xlane.f32.xlu0 %v1451
        %v1453 = vpop.xlane.xlu0 %1452
        %v1454 = vmul.f32 %v1453, %v1447
        %v1455 = vadd.f32 %v1454, 1e-05
        %v1456 = vrsqrt.pop %v1455
        %v1457 = vmul.f32 %v1449, %v1456
        %v1458 = vld [vmem:[%s11] sm:$0x1]
        %v1460 = vlaneseq
        %v1461 = vshrl.u32 %v1460, 7
        %v1462 = vsub.s32 0, %v1461
        %v1463 = vrot.slane %v1458, %v1462
        %v1465 = vmul.f32 %v1457, %v1463
        %v1466 = vld [vmem:[%s12] sm:$0x1]
        %v1468 = vlaneseq
        %v1469 = vshrl.u32 %v1468, 7
        %v1470 = vsub.s32 0, %v1469
        %v1471 = vrot.slane %v1466, %v1470
        %v1473 = vadd.f32 %v1465, %v1471
        %1474 = vst.msk [vmem:[%s488] sm:$0xf] %vm1443, %v1473
        %s1475 = sand.u32 %s328, 1
        %s1476 = scalar_lea.sflag [#allocation3], %s1475
        %s1477 = sand.u32 %s328, 1
        %s1478 = smul.addr %s1477, 4
        %s1479 = scalar_lea.vmem [#allocation2], %s1478
        %s1480 = sand.u32 %s354, 1
        %s1481 = scalar_lea.sflag [#allocation5], %s1480
        %s1482 = sand.u32 %s354, 1
        %s1483 = smul.addr %s1482, 16
        %s1484 = scalar_lea.vmem [#allocation4], %s1483
        // Predicated region
        $region73: #{tpu_custom_call.1} parent=71 // pred_check
          %p1485 = pneg %p338
        $region74: #{tpu_custom_call.1} parent=71 // pred_check_branch
          %1487 = sbr.rel (%p1485) target = $region76
        $region75: #{tpu_custom_call.1} parent=71 // pred_region
          %s1489 = ssub.s32 64, 64
          %1490 = vsyncadd %s1476, %s1489
          %s1491 = smul.addr %s32, 64
          %s1492 = scalar_lea.hbm %s13, %s1491
          %s1494 = sshll.u32 %s1479, 4
          %s1495 = int_to_ptr.vmem [resolvable:$true] %s1494
          %1497 = dma.vmem_to_hbm [thread:$0]  %s1495, 64, %s1492, %s1476
        $region76: #{tpu_custom_call.1} parent=71 // pred_fallthru
          _
        // Predicated region
        $region77: #{tpu_custom_call.1} parent=71 // pred_check
          %p1498 = pneg %p364
        $region78: #{tpu_custom_call.1} parent=71 // pred_check_branch
          %1500 = sbr.rel (%p1498) target = $region80
        $region79: #{tpu_custom_call.1} parent=71 // pred_region
          %s1502 = ssub.s32 256, 256
          %1503 = vsyncadd %s1481, %s1502
          %s1504 = smul.addr %s32, 4
          %s1505 = smul.addr %s1504, 64
          %s1506 = scalar_lea.hbm %s14, %s1505
          %s1507 = sshll.u32 %s1484, 4
          %s1508 = int_to_ptr.vmem [resolvable:$true] %s1507
          %1513 = dma.vmem_to_hbm [thread:$0]  %s1508, 256, %s1506, %s1481, 64, 64, 4
        $region80: #{tpu_custom_call.1} parent=71 // pred_fallthru
          _
      $region72: #{tpu_custom_call.1} parent=5 // pred_fallthru
        _
      %p1514 = scmp.le.s32.totalorder 2, %s27
      // Predicated region
      $region81: #{tpu_custom_call.1} parent=5 // pred_check
        %p1515 = pneg %p1514
      $region82: #{tpu_custom_call.1} parent=5 // pred_check_branch
        %1517 = sbr.rel (%p1515) target = $region84
      $region83: #{tpu_custom_call.1} parent=5 // pred_region
        %s1518 = ssub.s32 %s27, 2
        // Predicated region
        $region85: #{tpu_custom_call.1} parent=83 // pred_check
          %p1519 = pneg %p344
        $region86: #{tpu_custom_call.1} parent=83 // pred_check_branch
          %1521 = sbr.rel (%p1519) target = $region88
        $region87: #{tpu_custom_call.1} parent=83 // pred_region
          %s1522 = sand.u32 %s329, 1
          %s1523 = scalar_lea.sflag [#allocation3], %s1522
          %s1524 = sand.u32 %s329, 1
          %s1525 = smul.addr %s1524, 4
          %s1526 = scalar_lea.vmem [#allocation2], %s1525
          %1527 = dma.done %s1523, 64
        $region88: #{tpu_custom_call.1} parent=83 // pred_fallthru
          _
        // Predicated region
        $region89: #{tpu_custom_call.1} parent=83 // pred_check
          %p1528 = pneg %p370
        $region90: #{tpu_custom_call.1} parent=83 // pred_check_branch
          %1530 = sbr.rel (%p1528) target = $region92
        $region91: #{tpu_custom_call.1} parent=83 // pred_region
          %s1531 = sand.u32 %s355, 1
          %s1532 = scalar_lea.sflag [#allocation5], %s1531
          %s1533 = sand.u32 %s355, 1
          %s1534 = smul.addr %s1533, 16
          %s1535 = scalar_lea.vmem [#allocation4], %s1534
          %1536 = dma.done %s1532, 256
        $region92: #{tpu_custom_call.1} parent=83 // pred_fallthru
          _
      $region84: #{tpu_custom_call.1} parent=5 // pred_fallthru
        _
    $region6: #{tpu_custom_call.1} parent=1 // loop_footer
      %s31 = sadd.s32 1, %s27
    $region7: #{tpu_custom_call.1} parent=1 // loop_footer_branch
      %26 = sbr.rel target = $region3
    $region8: #{tpu_custom_call.1} parent=1 // loop_exit
      _
    %1537 = vsyncpa [#allocation3], 1
    %s1538 = scalar_lea.sflag [#allocation3], 1
    %1539 = vsyncpa %s1538, 1
    %1540 = vsyncpa [#allocation5], 1
    %s1541 = scalar_lea.sflag [#allocation5], 1
    %1542 = vsyncpa %s1541, 1

</llo_original>
